<compile_context>
chip_gen: v7x
topology: tpu7x:2x2x1
jax: 0.10.0
libtpu: 0.0.40
codegen_flags: <defaults>
</compile_context>

<pallas_src>
import jax
import jax.numpy as jnp
from jax.experimental import pallas as pl
from jax.experimental.pallas import tpu as pltpu

KW = 7    # kernel width
PAD = 3   # width padding


def conv1x7_matmul_kernel(x_ref, w_ref, o_ref):
    # x_ref: [TILE_M, KW*Cin] bf16  (ReLU'd im2col rows, cast in wrapper)
    # w_ref: [KW*Cin, Cout]   bf16  (full weight slab, replicated per grid step)
    # o_ref: [TILE_M, Cout]   f32   (lane-dense Cout=192)
    # Single big-K MXU matmul with f32 accumulation.
    o_ref[...] = jnp.dot(
        x_ref[...], w_ref[...], preferred_element_type=jnp.float32
    ).astype(o_ref.dtype)


def _num_tensorcores():
    """Best-effort TensorCore count per chip (2 on v7x/v5p/v4 megacore, else 1)."""
    try:
        d = jax.devices()[0]
        nc = getattr(d, "num_cores", None)
        if isinstance(nc, int) and nc > 0:
            return nc
        kind = str(getattr(d, "device_kind", "")).lower()
        if ("v7" in kind) or ("v5p" in kind) or ("v4" in kind):
            return 2
    except Exception:
        pass
    return 1


def _pick_row_tile(m, n_cores, cap=1024):
    """Row tile choice:
       * if splitting m evenly across the TensorCores gives a multiple-of-8 tile
         within the cap, use that (grid = (n_cores,), marked "parallel");
       * otherwise the largest divisor of m that is a multiple of 8 and <= cap;
       * fallback: full m (full-extent blocks are always legal)."""
    if n_cores > 1 and m % n_cores == 0:
        target = m // n_cores
        if target % 8 == 0 and target <= cap:
            return target
    cap = min(cap, m)
    for t in range(cap, 7, -1):
        if m % t == 0 and t % 8 == 0:
            return t
    return m


def relu_conv2d_1x7(x_nchw, weight_oihw):
    """x_nchw: [N, Cin, H, W] float32; weight_oihw: [Cout, Cin, 1, 7] float32."""
    N, Cin, H, W = x_nchw.shape
    Cout = weight_oihw.shape[0]

    # --- layout plumbing (plain JAX): NCHW -> NHWC, ReLU + bf16 cast (fused by XLA
    # into the transpose), pad width, im2col unfold.  ReLU commutes with zero-pad.
    x_nhwc = jnp.transpose(x_nchw, (0, 2, 3, 1))                     # [N,H,W,Cin]
    x_nhwc = jnp.maximum(x_nhwc, 0.0).astype(jnp.bfloat16)          # ReLU + cast: halves LHS bytes
    x_pad = jnp.pad(x_nhwc, ((0, 0), (0, 0), (PAD, PAD), (0, 0)))    # [N,H,W+6,Cin]
    taps = jnp.stack([x_pad[:, :, k:k + W, :] for k in range(KW)], axis=3)
    M = N * H * W
    K = KW * Cin
    x_unf = taps.reshape(M, K)                                        # [M, 1120] bf16

    # weight OIHW [Cout,Cin,1,KW] -> [KW,Cin,Cout] -> [KW*Cin, Cout] bf16
    # (same (k, cin) flattening order as the im2col rows).
    w = jnp.transpose(weight_oihw[:, :, 0, :], (2, 1, 0)).reshape(K, Cout)
    w = w.astype(jnp.bfloat16)

    n_cores = _num_tensorcores()
    tile_m = _pick_row_tile(M, n_cores)
    grid = (M // tile_m,)

    out = pl.pallas_call(
        conv1x7_matmul_kernel,
        # f32 output to match the PyTorch contract; switch to bf16 here if the
        # downstream consumer accepts it (halves the writeback).
        out_shape=jax.ShapeDtypeStruct((M, Cout), jnp.float32),
        grid=grid,
        in_specs=[
            pl.BlockSpec((tile_m, K), lambda i: (i, 0)),      # row tile of im2col LHS
            pl.BlockSpec((K, Cout), lambda i: (0, 0)),        # full weight slab
        ],
        out_specs=pl.BlockSpec((tile_m, Cout), lambda i: (i, 0)),  # lane-dense Cout
        compiler_params=pltpu.CompilerParams(
            dimension_semantics=("parallel",),                # megacore split on 2-TC chips
            vmem_limit_bytes=32 * 1024 * 1024,
        ),
    )(x_unf, w)

    out = out.reshape(N, H, W, Cout)
    # NOTE: NHWC consumers should skip this transpose (keeps Cout=192 lane-dense);
    # it is kept only to match the PyTorch NCHW contract.
    return jnp.transpose(out, (0, 3, 1, 2))


if __name__ == "__main__":
    key = jax.random.PRNGKey(0)
    kx, kw = jax.random.split(key)

    # Shapes implied by the module: N=1, Cin=160, Cout=192, kernel (1,7), spatial 12x12.
    N, Cin, H, W, Cout = 1, 160, 12, 12, 192
    x = jax.random.normal(kx, (N, Cin, H, W), dtype=jnp.float32)
    weight = jax.random.normal(kw, (Cout, Cin, 1, KW), dtype=jnp.float32) * 0.02

    y = relu_conv2d_1x7(x, weight)
    y = jax.block_until_ready(y)

    # Pure-JAX f32 reference (relu then conv, NCHW/OIHW).
    ref = jax.lax.conv_general_dilated(
        jnp.maximum(x, 0.0), weight,
        window_strides=(1, 1),
        padding=((0, 0), (PAD, PAD)),
        dimension_numbers=("NCHW", "OIHW", "NCHW"),
    )
    assert y.shape == (N, Cout, H, W), y.shape
    # bf16 MXU operands with f32 accumulation over K=1120 -> loosened tolerance vs f32 ref.
    assert jnp.allclose(y, ref, atol=2e-2, rtol=2e-2), float(jnp.max(jnp.abs(y - ref)))

    print("KERNEL_OK")
</pallas_src>

<mosaic_0001>
module attributes {stable_mosaic.version = 11 : i64} {
  func.func @conv1x7_matmul_kernel(%arg0: i32, %arg1: memref<144x1120xbf16, #tpu.memory_space<vmem>>, %arg2: memref<1120x192xbf16, #tpu.memory_space<vmem>>, %arg3: memref<144x192xf32, #tpu.memory_space<vmem>>) attributes {dimension_semantics = [#tpu.dimension_semantics<parallel>], iteration_bounds = array<i64: 1>, scalar_prefetch = 0 : i64, scratch_operands = 0 : i64, tpu.core_type = #tpu.core_type<tc>, window_params = [{transform_indices = @transform_0, window_bounds = array<i64: 144, 1120>}, {pipeline_mode = #tpu.pipeline_mode<synchronous>, transform_indices = @transform_1, window_bounds = array<i64: 1120, 192>}, {transform_indices = @transform_2, window_bounds = array<i64: 144, 192>}]} {
    %c0 = arith.constant 0 : index
    %c0_0 = arith.constant 0 : index
    %0 = vector.load %arg1[%c0, %c0_0] : memref<144x1120xbf16, #tpu.memory_space<vmem>>, vector<144x1120xbf16>
    %c0_1 = arith.constant 0 : index
    %c0_2 = arith.constant 0 : index
    %1 = vector.load %arg2[%c0_1, %c0_2] : memref<1120x192xbf16, #tpu.memory_space<vmem>>, vector<1120x192xbf16>
    %cst = arith.constant dense<0.000000e+00> : vector<144x192xf32>
    %2 = tpu.matmul %0, %1, %cst {dimension_numbers = #tpu.dot_dimension_numbers<[1], [0], [0], [1], [0, 0, 1, 1], [], []>} : vector<144x1120xbf16>, vector<1120x192xbf16>, vector<144x192xf32> -> vector<144x192xf32>
    %c0_3 = arith.constant 0 : index
    %c0_4 = arith.constant 0 : index
    %3 = vector.load %arg3[%c0_3, %c0_4] : memref<144x192xf32, #tpu.memory_space<vmem>>, vector<144x192xf32>
    tpu.vector_store %arg3[%c0_3, %c0_4], %2 {strides = array<i32>} : memref<144x192xf32, #tpu.memory_space<vmem>>, vector<144x192xf32>,
    return
  }
  func.func @transform_0(%arg0: i32) -> (i32, i32) {
    %c0_i32 = arith.constant 0 : i32
    %c0_i32_0 = arith.constant 0 : i32
    return %arg0, %c0_i32 : i32, i32
  }
  func.func @transform_1(%arg0: i32) -> (i32, i32) {
    %c0_i32 = arith.constant 0 : i32
    %c0_i32_0 = arith.constant 0 : i32
    %c0_i32_1 = arith.constant 0 : i32
    return %c0_i32, %c0_i32_0 : i32, i32
  }
  func.func @transform_2(%arg0: i32) -> (i32, i32) {
    %c0_i32 = arith.constant 0 : i32
    %c0_i32_0 = arith.constant 0 : i32
    return %arg0, %c0_i32 : i32, i32
  }
}

</mosaic_0001>

<llo_original>
// kernel: tpu_custom_call.1
$region0: #{tpu_custom_call.1}
  #allocation0 [shape = 'u32[]', space=smem, size = 0x4, offset = 0x4, fixed_abs, tag = 'smem constant byte address 0x4 - core index']
  #allocation1 [shape = 'u32[144,128]{1,0:T(1,128)}', space=vmem, size = 0x12000, scoped, tag = 'internal scratch']
  %s0 = inlined_call_operand.vmem [shape: bf16[144,1120], index: 0, kind: input, shape index: {}]
  %s1 = inlined_call_operand.vmem [shape: bf16[1120,192], index: 1, kind: input, shape index: {}]
  %s2 = inlined_call_operand.hbm [shape: f32[144,192], index: 2, kind: output, shape index: {}]
  %s3 = sld [smem:[#allocation0]]
  $region18: #{tpu_custom_call.1} parent=0
    _
  %s5 = ssub.s32 1, %s3
  %s6 = scalar_select 0, %s5, %s3
  $region1: #{tpu_custom_call.1} parent=0
    #allocation2 [shape = 'u8[147456]{0}', space=vmem, size = 0x24000, scoped, tag = 'output window, operand 0, single buffered']
    #allocation3 [shape = 's32[1]{0}', space=sflag, size = 0x4, scoped, tag = 'scoped memory for tpu_custom_call.1']
    %7 = vsyncpa [#allocation3], 0
    // Predicated region
    $region2: #{tpu_custom_call.1} parent=1 // pred_check
      _
    $region3: #{tpu_custom_call.1} parent=1 // pred_check_branch
      %9 = sbr.rel (0) target = $region5
    $region4: #{tpu_custom_call.1} parent=1 // pred_region
      _
    $region5: #{tpu_custom_call.1} parent=1 // pred_fallthru
      _
    // Predicated region
    $region6: #{tpu_custom_call.1} parent=1 // pred_check
      _
    $region7: #{tpu_custom_call.1} parent=1 // pred_check_branch
      %11 = sbr.rel (0) target = $region9
    $region8: #{tpu_custom_call.1} parent=1 // pred_region
      _
    $region9: #{tpu_custom_call.1} parent=1 // pred_fallthru
      _
    %v13 = vld [vmem:[%s0] sm:$0xff]
    %v14 = vld [vmem:[%s0 + $0x8] sm:$0xff]
    %v15 = vld [vmem:[%s0 + $0x10] sm:$0xff]
    %v16 = vld [vmem:[%s0 + $0x18] sm:$0xff]
    %v17 = vld [vmem:[%s0 + $0x20] sm:$0xf]
    %v18 = vld [vmem:[%s0 + $0x24] sm:$0xff]
    %v19 = vld [vmem:[%s0 + $0x2c] sm:$0xff]
    %v20 = vld [vmem:[%s0 + $0x34] sm:$0xff]
    %v21 = vld [vmem:[%s0 + $0x3c] sm:$0xff]
    %v22 = vld [vmem:[%s0 + $0x44] sm:$0xf]
    %v23 = vld [vmem:[%s0 + $0x48] sm:$0xff]
    %v24 = vld [vmem:[%s0 + $0x50] sm:$0xff]
    %v25 = vld [vmem:[%s0 + $0x58] sm:$0xff]
    %v26 = vld [vmem:[%s0 + $0x60] sm:$0xff]
    %v27 = vld [vmem:[%s0 + $0x68] sm:$0xf]
    %v28 = vld [vmem:[%s0 + $0x6c] sm:$0xff]
    %v29 = vld [vmem:[%s0 + $0x74] sm:$0xff]
    %v30 = vld [vmem:[%s0 + $0x7c] sm:$0xff]
    %v31 = vld [vmem:[%s0 + $0x84] sm:$0xff]
    %v32 = vld [vmem:[%s0 + $0x8c] sm:$0xf]
    %v33 = vld [vmem:[%s0 + $0x90] sm:$0xff]
    %v34 = vld [vmem:[%s0 + $0x98] sm:$0xff]
    %v35 = vld [vmem:[%s0 + $0xa0] sm:$0xff]
    %v36 = vld [vmem:[%s0 + $0xa8] sm:$0xff]
    %v37 = vld [vmem:[%s0 + $0xb0] sm:$0xf]
    %v38 = vld [vmem:[%s0 + $0xb4] sm:$0xff]
    %v39 = vld [vmem:[%s0 + $0xbc] sm:$0xff]
    %v40 = vld [vmem:[%s0 + $0xc4] sm:$0xff]
    %v41 = vld [vmem:[%s0 + $0xcc] sm:$0xff]
    %v42 = vld [vmem:[%s0 + $0xd4] sm:$0xf]
    %v43 = vld [vmem:[%s0 + $0xd8] sm:$0xff]
    %v44 = vld [vmem:[%s0 + $0xe0] sm:$0xff]
    %v45 = vld [vmem:[%s0 + $0xe8] sm:$0xff]
    %v46 = vld [vmem:[%s0 + $0xf0] sm:$0xff]
    %v47 = vld [vmem:[%s0 + $0xf8] sm:$0xf]
    %v48 = vld [vmem:[%s0 + $0xfc] sm:$0xff]
    %v49 = vld [vmem:[%s0 + $0x104] sm:$0xff]
    %v50 = vld [vmem:[%s0 + $0x10c] sm:$0xff]
    %v51 = vld [vmem:[%s0 + $0x114] sm:$0xff]
    %v52 = vld [vmem:[%s0 + $0x11c] sm:$0xf]
    %v53 = vld [vmem:[%s0 + $0x120] sm:$0xff]
    %v54 = vld [vmem:[%s0 + $0x128] sm:$0xff]
    %v55 = vld [vmem:[%s0 + $0x130] sm:$0xff]
    %v56 = vld [vmem:[%s0 + $0x138] sm:$0xff]
    %v57 = vld [vmem:[%s0 + $0x140] sm:$0xf]
    %v58 = vld [vmem:[%s0 + $0x144] sm:$0xff]
    %v59 = vld [vmem:[%s0 + $0x14c] sm:$0xff]
    %v60 = vld [vmem:[%s0 + $0x154] sm:$0xff]
    %v61 = vld [vmem:[%s0 + $0x15c] sm:$0xff]
    %v62 = vld [vmem:[%s0 + $0x164] sm:$0xf]
    %v63 = vld [vmem:[%s0 + $0x168] sm:$0xff]
    %v64 = vld [vmem:[%s0 + $0x170] sm:$0xff]
    %v65 = vld [vmem:[%s0 + $0x178] sm:$0xff]
    %v66 = vld [vmem:[%s0 + $0x180] sm:$0xff]
    %v67 = vld [vmem:[%s0 + $0x188] sm:$0xf]
    %v68 = vld [vmem:[%s0 + $0x18c] sm:$0xff]
    %v69 = vld [vmem:[%s0 + $0x194] sm:$0xff]
    %v70 = vld [vmem:[%s0 + $0x19c] sm:$0xff]
    %v71 = vld [vmem:[%s0 + $0x1a4] sm:$0xff]
    %v72 = vld [vmem:[%s0 + $0x1ac] sm:$0xf]
    %v73 = vld [vmem:[%s0 + $0x1b0] sm:$0xff]
    %v74 = vld [vmem:[%s0 + $0x1b8] sm:$0xff]
    %v75 = vld [vmem:[%s0 + $0x1c0] sm:$0xff]
    %v76 = vld [vmem:[%s0 + $0x1c8] sm:$0xff]
    %v77 = vld [vmem:[%s0 + $0x1d0] sm:$0xf]
    %v78 = vld [vmem:[%s0 + $0x1d4] sm:$0xff]
    %v79 = vld [vmem:[%s0 + $0x1dc] sm:$0xff]
    %v80 = vld [vmem:[%s0 + $0x1e4] sm:$0xff]
    %v81 = vld [vmem:[%s0 + $0x1ec] sm:$0xff]
    %v82 = vld [vmem:[%s0 + $0x1f4] sm:$0xf]
    %v83 = vld [vmem:[%s0 + $0x1f8] sm:$0xff]
    %v84 = vld [vmem:[%s0 + $0x200] sm:$0xff]
    %v85 = vld [vmem:[%s0 + $0x208] sm:$0xff]
    %v86 = vld [vmem:[%s0 + $0x210] sm:$0xff]
    %v87 = vld [vmem:[%s0 + $0x218] sm:$0xf]
    %v88 = vld [vmem:[%s0 + $0x21c] sm:$0xff]
    %v89 = vld [vmem:[%s0 + $0x224] sm:$0xff]
    %v90 = vld [vmem:[%s0 + $0x22c] sm:$0xff]
    %v91 = vld [vmem:[%s0 + $0x234] sm:$0xff]
    %v92 = vld [vmem:[%s0 + $0x23c] sm:$0xf]
    %v93 = vld [vmem:[%s0 + $0x240] sm:$0xff]
    %v94 = vld [vmem:[%s0 + $0x248] sm:$0xff]
    %v95 = vld [vmem:[%s0 + $0x250] sm:$0xff]
    %v96 = vld [vmem:[%s0 + $0x258] sm:$0xff]
    %v97 = vld [vmem:[%s0 + $0x260] sm:$0xf]
    %v98 = vld [vmem:[%s0 + $0x264] sm:$0xff]
    %v99 = vld [vmem:[%s0 + $0x26c] sm:$0xff]
    %v100 = vld [vmem:[%s0 + $0x274] sm:$0xff]
    %v101 = vld [vmem:[%s0 + $0x27c] sm:$0xff]
    %v102 = vld [vmem:[%s0 + $0x284] sm:$0xf]
    %v103 = vld [vmem:[%s1] sm:$0xff]
    %v104 = vld [vmem:[%s1 + $0x8] sm:$0xff]
    %v105 = vld [vmem:[%s1 + $0x10] sm:$0xff]
    %v106 = vld [vmem:[%s1 + $0x18] sm:$0xff]
    %v107 = vld [vmem:[%s1 + $0x20] sm:$0xff]
    %v108 = vld [vmem:[%s1 + $0x28] sm:$0xff]
    %v109 = vld [vmem:[%s1 + $0x30] sm:$0xff]
    %v110 = vld [vmem:[%s1 + $0x38] sm:$0xff]
    %v111 = vld [vmem:[%s1 + $0x40] sm:$0xff]
    %v112 = vld [vmem:[%s1 + $0x48] sm:$0xff]
    %v113 = vld [vmem:[%s1 + $0x50] sm:$0xff]
    %v114 = vld [vmem:[%s1 + $0x58] sm:$0xff]
    %v115 = vld [vmem:[%s1 + $0x60] sm:$0xff]
    %v116 = vld [vmem:[%s1 + $0x68] sm:$0xff]
    %v117 = vld [vmem:[%s1 + $0x70] sm:$0xff]
    %v118 = vld [vmem:[%s1 + $0x78] sm:$0xff]
    %v119 = vld [vmem:[%s1 + $0x80] sm:$0xff]
    %v120 = vld [vmem:[%s1 + $0x88] sm:$0xff]
    %v121 = vld [vmem:[%s1 + $0x90] sm:$0xff]
    %v122 = vld [vmem:[%s1 + $0x98] sm:$0xff]
    %v123 = vld [vmem:[%s1 + $0xa0] sm:$0xff]
    %v124 = vld [vmem:[%s1 + $0xa8] sm:$0xff]
    %v125 = vld [vmem:[%s1 + $0xb0] sm:$0xff]
    %v126 = vld [vmem:[%s1 + $0xb8] sm:$0xff]
    %v127 = vld [vmem:[%s1 + $0xc0] sm:$0xff]
    %v128 = vld [vmem:[%s1 + $0xc8] sm:$0xff]
    %v129 = vld [vmem:[%s1 + $0xd0] sm:$0xff]
    %v130 = vld [vmem:[%s1 + $0xd8] sm:$0xff]
    %v131 = vld [vmem:[%s1 + $0xe0] sm:$0xff]
    %v132 = vld [vmem:[%s1 + $0xe8] sm:$0xff]
    %v133 = vld [vmem:[%s1 + $0xf0] sm:$0xff]
    %v134 = vld [vmem:[%s1 + $0xf8] sm:$0xff]
    %v135 = vld [vmem:[%s1 + $0x100] sm:$0xff]
    %v136 = vld [vmem:[%s1 + $0x108] sm:$0xff]
    %v137 = vld [vmem:[%s1 + $0x110] sm:$0xff]
    %v138 = vld [vmem:[%s1 + $0x118] sm:$0xff]
    %v139 = vld [vmem:[%s1 + $0x120] sm:$0xff]
    %v140 = vld [vmem:[%s1 + $0x128] sm:$0xff]
    %v141 = vld [vmem:[%s1 + $0x130] sm:$0xff]
    %v142 = vld [vmem:[%s1 + $0x138] sm:$0xff]
    %v143 = vld [vmem:[%s1 + $0x140] sm:$0xff]
    %v144 = vld [vmem:[%s1 + $0x148] sm:$0xff]
    %v145 = vld [vmem:[%s1 + $0x150] sm:$0xff]
    %v146 = vld [vmem:[%s1 + $0x158] sm:$0xff]
    %v147 = vld [vmem:[%s1 + $0x160] sm:$0xff]
    %v148 = vld [vmem:[%s1 + $0x168] sm:$0xff]
    %v149 = vld [vmem:[%s1 + $0x170] sm:$0xff]
    %v150 = vld [vmem:[%s1 + $0x178] sm:$0xff]
    %v151 = vld [vmem:[%s1 + $0x180] sm:$0xff]
    %v152 = vld [vmem:[%s1 + $0x188] sm:$0xff]
    %v153 = vld [vmem:[%s1 + $0x190] sm:$0xff]
    %v154 = vld [vmem:[%s1 + $0x198] sm:$0xff]
    %v155 = vld [vmem:[%s1 + $0x1a0] sm:$0xff]
    %v156 = vld [vmem:[%s1 + $0x1a8] sm:$0xff]
    %v157 = vld [vmem:[%s1 + $0x1b0] sm:$0xff]
    %v158 = vld [vmem:[%s1 + $0x1b8] sm:$0xff]
    %v159 = vld [vmem:[%s1 + $0x1c0] sm:$0xff]
    %v160 = vld [vmem:[%s1 + $0x1c8] sm:$0xff]
    %v161 = vld [vmem:[%s1 + $0x1d0] sm:$0xff]
    %v162 = vld [vmem:[%s1 + $0x1d8] sm:$0xff]
    %v163 = vld [vmem:[%s1 + $0x1e0] sm:$0xff]
    %v164 = vld [vmem:[%s1 + $0x1e8] sm:$0xff]
    %v165 = vld [vmem:[%s1 + $0x1f0] sm:$0xff]
    %v166 = vld [vmem:[%s1 + $0x1f8] sm:$0xff]
    %v167 = vld [vmem:[%s1 + $0x200] sm:$0xff]
    %v168 = vld [vmem:[%s1 + $0x208] sm:$0xff]
    %v169 = vld [vmem:[%s1 + $0x210] sm:$0xff]
    %v170 = vld [vmem:[%s1 + $0x218] sm:$0xff]
    %v171 = vld [vmem:[%s1 + $0x220] sm:$0xff]
    %v172 = vld [vmem:[%s1 + $0x228] sm:$0xff]
    %v173 = vld [vmem:[%s1 + $0x230] sm:$0xff]
    %v174 = vld [vmem:[%s1 + $0x238] sm:$0xff]
    %v175 = vld [vmem:[%s1 + $0x240] sm:$0xff]
    %v176 = vld [vmem:[%s1 + $0x248] sm:$0xff]
    %v177 = vld [vmem:[%s1 + $0x250] sm:$0xff]
    %v178 = vld [vmem:[%s1 + $0x258] sm:$0xff]
    %v179 = vld [vmem:[%s1 + $0x260] sm:$0xff]
    %v180 = vld [vmem:[%s1 + $0x268] sm:$0xff]
    %v181 = vld [vmem:[%s1 + $0x270] sm:$0xff]
    %v182 = vld [vmem:[%s1 + $0x278] sm:$0xff]
    %v183 = vld [vmem:[%s1 + $0x280] sm:$0xff]
    %v184 = vld [vmem:[%s1 + $0x288] sm:$0xff]
    %v185 = vld [vmem:[%s1 + $0x290] sm:$0xff]
    %v186 = vld [vmem:[%s1 + $0x298] sm:$0xff]
    %v187 = vld [vmem:[%s1 + $0x2a0] sm:$0xff]
    %v188 = vld [vmem:[%s1 + $0x2a8] sm:$0xff]
    %v189 = vld [vmem:[%s1 + $0x2b0] sm:$0xff]
    %v190 = vld [vmem:[%s1 + $0x2b8] sm:$0xff]
    %v191 = vld [vmem:[%s1 + $0x2c0] sm:$0xff]
    %v192 = vld [vmem:[%s1 + $0x2c8] sm:$0xff]
    %v193 = vld [vmem:[%s1 + $0x2d0] sm:$0xff]
    %v194 = vld [vmem:[%s1 + $0x2d8] sm:$0xff]
    %v195 = vld [vmem:[%s1 + $0x2e0] sm:$0xff]
    %v196 = vld [vmem:[%s1 + $0x2e8] sm:$0xff]
    %v197 = vld [vmem:[%s1 + $0x2f0] sm:$0xff]
    %v198 = vld [vmem:[%s1 + $0x2f8] sm:$0xff]
    %v199 = vld [vmem:[%s1 + $0x300] sm:$0xff]
    %v200 = vld [vmem:[%s1 + $0x308] sm:$0xff]
    %v201 = vld [vmem:[%s1 + $0x310] sm:$0xff]
    %v202 = vld [vmem:[%s1 + $0x318] sm:$0xff]
    %v203 = vld [vmem:[%s1 + $0x320] sm:$0xff]
    %v204 = vld [vmem:[%s1 + $0x328] sm:$0xff]
    %v205 = vld [vmem:[%s1 + $0x330] sm:$0xff]
    %v206 = vld [vmem:[%s1 + $0x338] sm:$0xff]
    %v207 = vld [vmem:[%s1 + $0x340] sm:$0xff]
    %v208 = vld [vmem:[%s1 + $0x348] sm:$0xff]
    %v209 = vld [vmem:[%s1 + $0x350] sm:$0xff]
    %v210 = vld [vmem:[%s1 + $0x358] sm:$0xff]
    %v211 = vld [vmem:[%s1 + $0x360] sm:$0xff]
    %v212 = vld [vmem:[%s1 + $0x368] sm:$0xff]
    %v213 = vld [vmem:[%s1 + $0x370] sm:$0xff]
    %v214 = vld [vmem:[%s1 + $0x378] sm:$0xff]
    %v215 = vld [vmem:[%s1 + $0x380] sm:$0xff]
    %v216 = vld [vmem:[%s1 + $0x388] sm:$0xff]
    %v217 = vld [vmem:[%s1 + $0x390] sm:$0xff]
    %v218 = vld [vmem:[%s1 + $0x398] sm:$0xff]
    %v219 = vld [vmem:[%s1 + $0x3a0] sm:$0xff]
    %v220 = vld [vmem:[%s1 + $0x3a8] sm:$0xff]
    %v221 = vld [vmem:[%s1 + $0x3b0] sm:$0xff]
    %v222 = vld [vmem:[%s1 + $0x3b8] sm:$0xff]
    %v223 = vld [vmem:[%s1 + $0x3c0] sm:$0xff]
    %v224 = vld [vmem:[%s1 + $0x3c8] sm:$0xff]
    %v225 = vld [vmem:[%s1 + $0x3d0] sm:$0xff]
    %v226 = vld [vmem:[%s1 + $0x3d8] sm:$0xff]
    %v227 = vld [vmem:[%s1 + $0x3e0] sm:$0xff]
    %v228 = vld [vmem:[%s1 + $0x3e8] sm:$0xff]
    %v229 = vld [vmem:[%s1 + $0x3f0] sm:$0xff]
    %v230 = vld [vmem:[%s1 + $0x3f8] sm:$0xff]
    %v231 = vld [vmem:[%s1 + $0x400] sm:$0xff]
    %v232 = vld [vmem:[%s1 + $0x408] sm:$0xff]
    %v233 = vld [vmem:[%s1 + $0x410] sm:$0xff]
    %v234 = vld [vmem:[%s1 + $0x418] sm:$0xff]
    %v235 = vld [vmem:[%s1 + $0x420] sm:$0xff]
    %v236 = vld [vmem:[%s1 + $0x428] sm:$0xff]
    %v237 = vld [vmem:[%s1 + $0x430] sm:$0xff]
    %v238 = vld [vmem:[%s1 + $0x438] sm:$0xff]
    %v239 = vld [vmem:[%s1 + $0x440] sm:$0xff]
    %v240 = vld [vmem:[%s1 + $0x448] sm:$0xff]
    %v241 = vld [vmem:[%s1 + $0x450] sm:$0xff]
    %v242 = vld [vmem:[%s1 + $0x458] sm:$0xff]
    %v333 = vunpack.c.l.b16 %v13
    %v334 = vunpack.c.h.b16 %v13
    %v335 = vunpack.c.l.b16 %v14
    %v336 = vunpack.c.h.b16 %v14
    %v337 = vunpack.c.l.b16 %v15
    %v338 = vunpack.c.h.b16 %v15
    %v339 = vunpack.c.l.b16 %v16
    %v340 = vunpack.c.h.b16 %v16
    %v341 = vunpack.c.l.b16 %v17
    %v342 = vunpack.c.l.b16 %v18
    %v343 = vunpack.c.h.b16 %v18
    %v344 = vunpack.c.l.b16 %v19
    %v345 = vunpack.c.h.b16 %v19
    %v346 = vunpack.c.l.b16 %v20
    %v347 = vunpack.c.h.b16 %v20
    %v348 = vunpack.c.l.b16 %v21
    %v349 = vunpack.c.h.b16 %v21
    %v350 = vunpack.c.l.b16 %v22
    %v351 = vunpack.c.l.b16 %v23
    %v352 = vunpack.c.h.b16 %v23
    %v353 = vunpack.c.l.b16 %v24
    %v354 = vunpack.c.h.b16 %v24
    %v355 = vunpack.c.l.b16 %v25
    %v356 = vunpack.c.h.b16 %v25
    %v357 = vunpack.c.l.b16 %v26
    %v358 = vunpack.c.h.b16 %v26
    %v359 = vunpack.c.l.b16 %v27
    %v360 = vunpack.c.l.b16 %v28
    %v361 = vunpack.c.h.b16 %v28
    %v362 = vunpack.c.l.b16 %v29
    %v363 = vunpack.c.h.b16 %v29
    %v364 = vunpack.c.l.b16 %v30
    %v365 = vunpack.c.h.b16 %v30
    %v366 = vunpack.c.l.b16 %v31
    %v367 = vunpack.c.h.b16 %v31
    %v368 = vunpack.c.l.b16 %v32
    %v369 = vunpack.c.l.b16 %v33
    %v370 = vunpack.c.h.b16 %v33
    %v371 = vunpack.c.l.b16 %v34
    %v372 = vunpack.c.h.b16 %v34
    %v373 = vunpack.c.l.b16 %v35
    %v374 = vunpack.c.h.b16 %v35
    %v375 = vunpack.c.l.b16 %v36
    %v376 = vunpack.c.h.b16 %v36
    %v377 = vunpack.c.l.b16 %v37
    %v378 = vunpack.c.l.b16 %v38
    %v379 = vunpack.c.h.b16 %v38
    %v380 = vunpack.c.l.b16 %v39
    %v381 = vunpack.c.h.b16 %v39
    %v382 = vunpack.c.l.b16 %v40
    %v383 = vunpack.c.h.b16 %v40
    %v384 = vunpack.c.l.b16 %v41
    %v385 = vunpack.c.h.b16 %v41
    %v386 = vunpack.c.l.b16 %v42
    %v387 = vunpack.c.l.b16 %v43
    %v388 = vunpack.c.h.b16 %v43
    %v389 = vunpack.c.l.b16 %v44
    %v390 = vunpack.c.h.b16 %v44
    %v391 = vunpack.c.l.b16 %v45
    %v392 = vunpack.c.h.b16 %v45
    %v393 = vunpack.c.l.b16 %v46
    %v394 = vunpack.c.h.b16 %v46
    %v395 = vunpack.c.l.b16 %v47
    %v396 = vunpack.c.l.b16 %v48
    %v397 = vunpack.c.h.b16 %v48
    %v398 = vunpack.c.l.b16 %v49
    %v399 = vunpack.c.h.b16 %v49
    %v400 = vunpack.c.l.b16 %v50
    %v401 = vunpack.c.h.b16 %v50
    %v402 = vunpack.c.l.b16 %v51
    %v403 = vunpack.c.h.b16 %v51
    %v404 = vunpack.c.l.b16 %v52
    %v405 = vunpack.c.l.b16 %v53
    %v406 = vunpack.c.h.b16 %v53
    %v407 = vunpack.c.l.b16 %v54
    %v408 = vunpack.c.h.b16 %v54
    %v409 = vunpack.c.l.b16 %v55
    %v410 = vunpack.c.h.b16 %v55
    %v411 = vunpack.c.l.b16 %v56
    %v412 = vunpack.c.h.b16 %v56
    %v413 = vunpack.c.l.b16 %v57
    %v414 = vunpack.c.l.b16 %v58
    %v415 = vunpack.c.h.b16 %v58
    %v416 = vunpack.c.l.b16 %v59
    %v417 = vunpack.c.h.b16 %v59
    %v418 = vunpack.c.l.b16 %v60
    %v419 = vunpack.c.h.b16 %v60
    %v420 = vunpack.c.l.b16 %v61
    %v421 = vunpack.c.h.b16 %v61
    %v422 = vunpack.c.l.b16 %v62
    %v423 = vunpack.c.l.b16 %v63
    %v424 = vunpack.c.h.b16 %v63
    %v425 = vunpack.c.l.b16 %v64
    %v426 = vunpack.c.h.b16 %v64
    %v427 = vunpack.c.l.b16 %v65
    %v428 = vunpack.c.h.b16 %v65
    %v429 = vunpack.c.l.b16 %v66
    %v430 = vunpack.c.h.b16 %v66
    %v431 = vunpack.c.l.b16 %v67
    %v432 = vunpack.c.l.b16 %v68
    %v433 = vunpack.c.h.b16 %v68
    %v434 = vunpack.c.l.b16 %v69
    %v435 = vunpack.c.h.b16 %v69
    %v436 = vunpack.c.l.b16 %v70
    %v437 = vunpack.c.h.b16 %v70
    %v438 = vunpack.c.l.b16 %v71
    %v439 = vunpack.c.h.b16 %v71
    %v440 = vunpack.c.l.b16 %v72
    %v441 = vunpack.c.l.b16 %v73
    %v442 = vunpack.c.h.b16 %v73
    %v443 = vunpack.c.l.b16 %v74
    %v444 = vunpack.c.h.b16 %v74
    %v445 = vunpack.c.l.b16 %v75
    %v446 = vunpack.c.h.b16 %v75
    %v447 = vunpack.c.l.b16 %v76
    %v448 = vunpack.c.h.b16 %v76
    %v449 = vunpack.c.l.b16 %v77
    %v450 = vunpack.c.l.b16 %v78
    %v451 = vunpack.c.h.b16 %v78
    %v452 = vunpack.c.l.b16 %v79
    %v453 = vunpack.c.h.b16 %v79
    %v454 = vunpack.c.l.b16 %v80
    %v455 = vunpack.c.h.b16 %v80
    %v456 = vunpack.c.l.b16 %v81
    %v457 = vunpack.c.h.b16 %v81
    %v458 = vunpack.c.l.b16 %v82
    %v459 = vunpack.c.l.b16 %v83
    %v460 = vunpack.c.h.b16 %v83
    %v461 = vunpack.c.l.b16 %v84
    %v462 = vunpack.c.h.b16 %v84
    %v463 = vunpack.c.l.b16 %v85
    %v464 = vunpack.c.h.b16 %v85
    %v465 = vunpack.c.l.b16 %v86
    %v466 = vunpack.c.h.b16 %v86
    %v467 = vunpack.c.l.b16 %v87
    %v468 = vunpack.c.l.b16 %v88
    %v469 = vunpack.c.h.b16 %v88
    %v470 = vunpack.c.l.b16 %v89
    %v471 = vunpack.c.h.b16 %v89
    %v472 = vunpack.c.l.b16 %v90
    %v473 = vunpack.c.h.b16 %v90
    %v474 = vunpack.c.l.b16 %v91
    %v475 = vunpack.c.h.b16 %v91
    %v476 = vunpack.c.l.b16 %v92
    %v477 = vunpack.c.l.b16 %v93
    %v478 = vunpack.c.h.b16 %v93
    %v479 = vunpack.c.l.b16 %v94
    %v480 = vunpack.c.h.b16 %v94
    %v481 = vunpack.c.l.b16 %v95
    %v482 = vunpack.c.h.b16 %v95
    %v483 = vunpack.c.l.b16 %v96
    %v484 = vunpack.c.h.b16 %v96
    %v485 = vunpack.c.l.b16 %v97
    %v486 = vunpack.c.l.b16 %v98
    %v487 = vunpack.c.h.b16 %v98
    %v488 = vunpack.c.l.b16 %v99
    %v489 = vunpack.c.h.b16 %v99
    %v490 = vunpack.c.l.b16 %v100
    %v491 = vunpack.c.h.b16 %v100
    %v492 = vunpack.c.l.b16 %v101
    %v493 = vunpack.c.h.b16 %v101
    %v494 = vunpack.c.l.b16 %v102
    %v495 = vpack.c.b16 %v342, %v333
    %v496 = vpack.c.b16 %v343, %v334
    %v497 = vpack.c.b16 %v344, %v335
    %v498 = vpack.c.b16 %v345, %v336
    %v499 = vpack.c.b16 %v346, %v337
    %v500 = vpack.c.b16 %v347, %v338
    %v501 = vpack.c.b16 %v348, %v339
    %v502 = vpack.c.b16 %v349, %v340
    %v503 = vpack.c.b16 %v350, %v341
    %v504 = vpack.c.b16 %v360, %v351
    %v505 = vpack.c.b16 %v361, %v352
    %v506 = vpack.c.b16 %v362, %v353
    %v507 = vpack.c.b16 %v363, %v354
    %v508 = vpack.c.b16 %v364, %v355
    %v509 = vpack.c.b16 %v365, %v356
    %v510 = vpack.c.b16 %v366, %v357
    %v511 = vpack.c.b16 %v367, %v358
    %v512 = vpack.c.b16 %v368, %v359
    %v513 = vpack.c.b16 %v378, %v369
    %v514 = vpack.c.b16 %v379, %v370
    %v515 = vpack.c.b16 %v380, %v371
    %v516 = vpack.c.b16 %v381, %v372
    %v517 = vpack.c.b16 %v382, %v373
    %v518 = vpack.c.b16 %v383, %v374
    %v519 = vpack.c.b16 %v384, %v375
    %v520 = vpack.c.b16 %v385, %v376
    %v521 = vpack.c.b16 %v386, %v377
    %v522 = vpack.c.b16 %v396, %v387
    %v523 = vpack.c.b16 %v397, %v388
    %v524 = vpack.c.b16 %v398, %v389
    %v525 = vpack.c.b16 %v399, %v390
    %v526 = vpack.c.b16 %v400, %v391
    %v527 = vpack.c.b16 %v401, %v392
    %v528 = vpack.c.b16 %v402, %v393
    %v529 = vpack.c.b16 %v403, %v394
    %v530 = vpack.c.b16 %v404, %v395
    %v531 = vpack.c.b16 %v414, %v405
    %v532 = vpack.c.b16 %v415, %v406
    %v533 = vpack.c.b16 %v416, %v407
    %v534 = vpack.c.b16 %v417, %v408
    %v535 = vpack.c.b16 %v418, %v409
    %v536 = vpack.c.b16 %v419, %v410
    %v537 = vpack.c.b16 %v420, %v411
    %v538 = vpack.c.b16 %v421, %v412
    %v539 = vpack.c.b16 %v422, %v413
    %v540 = vpack.c.b16 %v432, %v423
    %v541 = vpack.c.b16 %v433, %v424
    %v542 = vpack.c.b16 %v434, %v425
    %v543 = vpack.c.b16 %v435, %v426
    %v544 = vpack.c.b16 %v436, %v427
    %v545 = vpack.c.b16 %v437, %v428
    %v546 = vpack.c.b16 %v438, %v429
    %v547 = vpack.c.b16 %v439, %v430
    %v548 = vpack.c.b16 %v440, %v431
    %v549 = vpack.c.b16 %v450, %v441
    %v550 = vpack.c.b16 %v451, %v442
    %v551 = vpack.c.b16 %v452, %v443
    %v552 = vpack.c.b16 %v453, %v444
    %v553 = vpack.c.b16 %v454, %v445
    %v554 = vpack.c.b16 %v455, %v446
    %v555 = vpack.c.b16 %v456, %v447
    %v556 = vpack.c.b16 %v457, %v448
    %v557 = vpack.c.b16 %v458, %v449
    %v558 = vpack.c.b16 %v468, %v459
    %v559 = vpack.c.b16 %v469, %v460
    %v560 = vpack.c.b16 %v470, %v461
    %v561 = vpack.c.b16 %v471, %v462
    %v562 = vpack.c.b16 %v472, %v463
    %v563 = vpack.c.b16 %v473, %v464
    %v564 = vpack.c.b16 %v474, %v465
    %v565 = vpack.c.b16 %v475, %v466
    %v566 = vpack.c.b16 %v476, %v467
    %v567 = vpack.c.b16 %v486, %v477
    %v568 = vpack.c.b16 %v487, %v478
    %v569 = vpack.c.b16 %v488, %v479
    %v570 = vpack.c.b16 %v489, %v480
    %v571 = vpack.c.b16 %v490, %v481
    %v572 = vpack.c.b16 %v491, %v482
    %v573 = vpack.c.b16 %v492, %v483
    %v574 = vpack.c.b16 %v493, %v484
    %v575 = vpack.c.b16 %v494, %v485
    %v788 = vunpack.c.l.b16 %v103
    %v789 = vunpack.c.h.b16 %v103
    %v790 = vunpack.c.l.b16 %v104
    %v791 = vunpack.c.h.b16 %v104
    %v792 = vunpack.c.l.b16 %v105
    %v793 = vunpack.c.h.b16 %v105
    %v794 = vunpack.c.l.b16 %v106
    %v795 = vunpack.c.h.b16 %v106
    %v796 = vunpack.c.l.b16 %v107
    %v797 = vunpack.c.h.b16 %v107
    %v798 = vunpack.c.l.b16 %v108
    %v799 = vunpack.c.h.b16 %v108
    %v800 = vunpack.c.l.b16 %v109
    %v801 = vunpack.c.h.b16 %v109
    %v802 = vunpack.c.l.b16 %v110
    %v803 = vunpack.c.h.b16 %v110
    %v804 = vunpack.c.l.b16 %v111
    %v805 = vunpack.c.h.b16 %v111
    %v806 = vunpack.c.l.b16 %v112
    %v807 = vunpack.c.h.b16 %v112
    %v808 = vunpack.c.l.b16 %v113
    %v809 = vunpack.c.h.b16 %v113
    %v810 = vunpack.c.l.b16 %v114
    %v811 = vunpack.c.h.b16 %v114
    %v812 = vunpack.c.l.b16 %v115
    %v813 = vunpack.c.h.b16 %v115
    %v814 = vunpack.c.l.b16 %v116
    %v815 = vunpack.c.h.b16 %v116
    %v816 = vunpack.c.l.b16 %v117
    %v817 = vunpack.c.h.b16 %v117
    %v818 = vunpack.c.l.b16 %v118
    %v819 = vunpack.c.h.b16 %v118
    %v820 = vunpack.c.l.b16 %v119
    %v821 = vunpack.c.h.b16 %v119
    %v822 = vunpack.c.l.b16 %v120
    %v823 = vunpack.c.h.b16 %v120
    %v824 = vunpack.c.l.b16 %v121
    %v825 = vunpack.c.h.b16 %v121
    %v826 = vunpack.c.l.b16 %v122
    %v827 = vunpack.c.h.b16 %v122
    %v828 = vunpack.c.l.b16 %v123
    %v829 = vunpack.c.h.b16 %v123
    %v830 = vunpack.c.l.b16 %v124
    %v831 = vunpack.c.h.b16 %v124
    %v832 = vunpack.c.l.b16 %v125
    %v833 = vunpack.c.h.b16 %v125
    %v834 = vunpack.c.l.b16 %v126
    %v835 = vunpack.c.h.b16 %v126
    %v836 = vunpack.c.l.b16 %v127
    %v837 = vunpack.c.h.b16 %v127
    %v838 = vunpack.c.l.b16 %v128
    %v839 = vunpack.c.h.b16 %v128
    %v840 = vunpack.c.l.b16 %v129
    %v841 = vunpack.c.h.b16 %v129
    %v842 = vunpack.c.l.b16 %v130
    %v843 = vunpack.c.h.b16 %v130
    %v844 = vunpack.c.l.b16 %v131
    %v845 = vunpack.c.h.b16 %v131
    %v846 = vunpack.c.l.b16 %v132
    %v847 = vunpack.c.h.b16 %v132
    %v848 = vunpack.c.l.b16 %v133
    %v849 = vunpack.c.h.b16 %v133
    %v850 = vunpack.c.l.b16 %v134
    %v851 = vunpack.c.h.b16 %v134
    %v852 = vunpack.c.l.b16 %v135
    %v853 = vunpack.c.h.b16 %v135
    %v854 = vunpack.c.l.b16 %v136
    %v855 = vunpack.c.h.b16 %v136
    %v856 = vunpack.c.l.b16 %v137
    %v857 = vunpack.c.h.b16 %v137
    %v858 = vunpack.c.l.b16 %v138
    %v859 = vunpack.c.h.b16 %v138
    %v860 = vunpack.c.l.b16 %v139
    %v861 = vunpack.c.h.b16 %v139
    %v862 = vunpack.c.l.b16 %v140
    %v863 = vunpack.c.h.b16 %v140
    %v864 = vunpack.c.l.b16 %v141
    %v865 = vunpack.c.h.b16 %v141
    %v866 = vunpack.c.l.b16 %v142
    %v867 = vunpack.c.h.b16 %v142
    %v868 = vunpack.c.l.b16 %v143
    %v869 = vunpack.c.h.b16 %v143
    %v870 = vunpack.c.l.b16 %v144
    %v871 = vunpack.c.h.b16 %v144
    %v872 = vunpack.c.l.b16 %v145
    %v873 = vunpack.c.h.b16 %v145
    %v874 = vunpack.c.l.b16 %v146
    %v875 = vunpack.c.h.b16 %v146
    %v876 = vunpack.c.l.b16 %v147
    %v877 = vunpack.c.h.b16 %v147
    %v878 = vunpack.c.l.b16 %v148
    %v879 = vunpack.c.h.b16 %v148
    %v880 = vunpack.c.l.b16 %v149
    %v881 = vunpack.c.h.b16 %v149
    %v882 = vunpack.c.l.b16 %v150
    %v883 = vunpack.c.h.b16 %v150
    %v884 = vunpack.c.l.b16 %v151
    %v885 = vunpack.c.h.b16 %v151
    %v886 = vunpack.c.l.b16 %v152
    %v887 = vunpack.c.h.b16 %v152
    %v888 = vunpack.c.l.b16 %v153
    %v889 = vunpack.c.h.b16 %v153
    %v890 = vunpack.c.l.b16 %v154
    %v891 = vunpack.c.h.b16 %v154
    %v892 = vunpack.c.l.b16 %v155
    %v893 = vunpack.c.h.b16 %v155
    %v894 = vunpack.c.l.b16 %v156
    %v895 = vunpack.c.h.b16 %v156
    %v896 = vunpack.c.l.b16 %v157
    %v897 = vunpack.c.h.b16 %v157
    %v898 = vunpack.c.l.b16 %v158
    %v899 = vunpack.c.h.b16 %v158
    %v900 = vunpack.c.l.b16 %v159
    %v901 = vunpack.c.h.b16 %v159
    %v902 = vunpack.c.l.b16 %v160
    %v903 = vunpack.c.h.b16 %v160
    %v904 = vunpack.c.l.b16 %v161
    %v905 = vunpack.c.h.b16 %v161
    %v906 = vunpack.c.l.b16 %v162
    %v907 = vunpack.c.h.b16 %v162
    %v908 = vunpack.c.l.b16 %v163
    %v909 = vunpack.c.h.b16 %v163
    %v910 = vunpack.c.l.b16 %v164
    %v911 = vunpack.c.h.b16 %v164
    %v912 = vunpack.c.l.b16 %v165
    %v913 = vunpack.c.h.b16 %v165
    %v914 = vunpack.c.l.b16 %v166
    %v915 = vunpack.c.h.b16 %v166
    %v916 = vunpack.c.l.b16 %v167
    %v917 = vunpack.c.h.b16 %v167
    %v918 = vunpack.c.l.b16 %v168
    %v919 = vunpack.c.h.b16 %v168
    %v920 = vunpack.c.l.b16 %v169
    %v921 = vunpack.c.h.b16 %v169
    %v922 = vunpack.c.l.b16 %v170
    %v923 = vunpack.c.h.b16 %v170
    %v924 = vunpack.c.l.b16 %v171
    %v925 = vunpack.c.h.b16 %v171
    %v926 = vunpack.c.l.b16 %v172
    %v927 = vunpack.c.h.b16 %v172
    %v928 = vunpack.c.l.b16 %v173
    %v929 = vunpack.c.h.b16 %v173
    %v930 = vunpack.c.l.b16 %v174
    %v931 = vunpack.c.h.b16 %v174
    %v932 = vunpack.c.l.b16 %v175
    %v933 = vunpack.c.h.b16 %v175
    %v934 = vunpack.c.l.b16 %v176
    %v935 = vunpack.c.h.b16 %v176
    %v936 = vunpack.c.l.b16 %v177
    %v937 = vunpack.c.h.b16 %v177
    %v938 = vunpack.c.l.b16 %v178
    %v939 = vunpack.c.h.b16 %v178
    %v940 = vunpack.c.l.b16 %v179
    %v941 = vunpack.c.h.b16 %v179
    %v942 = vunpack.c.l.b16 %v180
    %v943 = vunpack.c.h.b16 %v180
    %v944 = vunpack.c.l.b16 %v181
    %v945 = vunpack.c.h.b16 %v181
    %v946 = vunpack.c.l.b16 %v182
    %v947 = vunpack.c.h.b16 %v182
    %v948 = vunpack.c.l.b16 %v183
    %v949 = vunpack.c.h.b16 %v183
    %v950 = vunpack.c.l.b16 %v184
    %v951 = vunpack.c.h.b16 %v184
    %v952 = vunpack.c.l.b16 %v185
    %v953 = vunpack.c.h.b16 %v185
    %v954 = vunpack.c.l.b16 %v186
    %v955 = vunpack.c.h.b16 %v186
    %v956 = vunpack.c.l.b16 %v187
    %v957 = vunpack.c.h.b16 %v187
    %v958 = vunpack.c.l.b16 %v188
    %v959 = vunpack.c.h.b16 %v188
    %v960 = vunpack.c.l.b16 %v189
    %v961 = vunpack.c.h.b16 %v189
    %v962 = vunpack.c.l.b16 %v190
    %v963 = vunpack.c.h.b16 %v190
    %v964 = vunpack.c.l.b16 %v191
    %v965 = vunpack.c.h.b16 %v191
    %v966 = vunpack.c.l.b16 %v192
    %v967 = vunpack.c.h.b16 %v192
    %v968 = vunpack.c.l.b16 %v193
    %v969 = vunpack.c.h.b16 %v193
    %v970 = vunpack.c.l.b16 %v194
    %v971 = vunpack.c.h.b16 %v194
    %v972 = vunpack.c.l.b16 %v195
    %v973 = vunpack.c.h.b16 %v195
    %v974 = vunpack.c.l.b16 %v196
    %v975 = vunpack.c.h.b16 %v196
    %v976 = vunpack.c.l.b16 %v197
    %v977 = vunpack.c.h.b16 %v197
    %v978 = vunpack.c.l.b16 %v198
    %v979 = vunpack.c.h.b16 %v198
    %v980 = vunpack.c.l.b16 %v199
    %v981 = vunpack.c.h.b16 %v199
    %v982 = vunpack.c.l.b16 %v200
    %v983 = vunpack.c.h.b16 %v200
    %v984 = vunpack.c.l.b16 %v201
    %v985 = vunpack.c.h.b16 %v201
    %v986 = vunpack.c.l.b16 %v202
    %v987 = vunpack.c.h.b16 %v202
    %v988 = vunpack.c.l.b16 %v203
    %v989 = vunpack.c.h.b16 %v203
    %v990 = vunpack.c.l.b16 %v204
    %v991 = vunpack.c.h.b16 %v204
    %v992 = vunpack.c.l.b16 %v205
    %v993 = vunpack.c.h.b16 %v205
    %v994 = vunpack.c.l.b16 %v206
    %v995 = vunpack.c.h.b16 %v206
    %v996 = vunpack.c.l.b16 %v207
    %v997 = vunpack.c.h.b16 %v207
    %v998 = vunpack.c.l.b16 %v208
    %v999 = vunpack.c.h.b16 %v208
    %v1000 = vunpack.c.l.b16 %v209
    %v1001 = vunpack.c.h.b16 %v209
    %v1002 = vunpack.c.l.b16 %v210
    %v1003 = vunpack.c.h.b16 %v210
    %v1004 = vunpack.c.l.b16 %v211
    %v1005 = vunpack.c.h.b16 %v211
    %v1006 = vunpack.c.l.b16 %v212
    %v1007 = vunpack.c.h.b16 %v212
    %v1008 = vunpack.c.l.b16 %v213
    %v1009 = vunpack.c.h.b16 %v213
    %v1010 = vunpack.c.l.b16 %v214
    %v1011 = vunpack.c.h.b16 %v214
    %v1012 = vunpack.c.l.b16 %v215
    %v1013 = vunpack.c.h.b16 %v215
    %v1014 = vunpack.c.l.b16 %v216
    %v1015 = vunpack.c.h.b16 %v216
    %v1016 = vunpack.c.l.b16 %v217
    %v1017 = vunpack.c.h.b16 %v217
    %v1018 = vunpack.c.l.b16 %v218
    %v1019 = vunpack.c.h.b16 %v218
    %v1020 = vunpack.c.l.b16 %v219
    %v1021 = vunpack.c.h.b16 %v219
    %v1022 = vunpack.c.l.b16 %v220
    %v1023 = vunpack.c.h.b16 %v220
    %v1024 = vunpack.c.l.b16 %v221
    %v1025 = vunpack.c.h.b16 %v221
    %v1026 = vunpack.c.l.b16 %v222
    %v1027 = vunpack.c.h.b16 %v222
    %v1028 = vunpack.c.l.b16 %v223
    %v1029 = vunpack.c.h.b16 %v223
    %v1030 = vunpack.c.l.b16 %v224
    %v1031 = vunpack.c.h.b16 %v224
    %v1032 = vunpack.c.l.b16 %v225
    %v1033 = vunpack.c.h.b16 %v225
    %v1034 = vunpack.c.l.b16 %v226
    %v1035 = vunpack.c.h.b16 %v226
    %v1036 = vunpack.c.l.b16 %v227
    %v1037 = vunpack.c.h.b16 %v227
    %v1038 = vunpack.c.l.b16 %v228
    %v1039 = vunpack.c.h.b16 %v228
    %v1040 = vunpack.c.l.b16 %v229
    %v1041 = vunpack.c.h.b16 %v229
    %v1042 = vunpack.c.l.b16 %v230
    %v1043 = vunpack.c.h.b16 %v230
    %v1044 = vunpack.c.l.b16 %v231
    %v1045 = vunpack.c.h.b16 %v231
    %v1046 = vunpack.c.l.b16 %v232
    %v1047 = vunpack.c.h.b16 %v232
    %v1048 = vunpack.c.l.b16 %v233
    %v1049 = vunpack.c.h.b16 %v233
    %v1050 = vunpack.c.l.b16 %v234
    %v1051 = vunpack.c.h.b16 %v234
    %v1052 = vunpack.c.l.b16 %v235
    %v1053 = vunpack.c.h.b16 %v235
    %v1054 = vunpack.c.l.b16 %v236
    %v1055 = vunpack.c.h.b16 %v236
    %v1056 = vunpack.c.l.b16 %v237
    %v1057 = vunpack.c.h.b16 %v237
    %v1058 = vunpack.c.l.b16 %v238
    %v1059 = vunpack.c.h.b16 %v238
    %v1060 = vunpack.c.l.b16 %v239
    %v1061 = vunpack.c.h.b16 %v239
    %v1062 = vunpack.c.l.b16 %v240
    %v1063 = vunpack.c.h.b16 %v240
    %v1064 = vunpack.c.l.b16 %v241
    %v1065 = vunpack.c.h.b16 %v241
    %v1066 = vunpack.c.l.b16 %v242
    %v1067 = vunpack.c.h.b16 %v242
    %v1068 = vpack.c.b16 %v790, %v788
    %v1069 = vpack.c.b16 %v791, %v789
    %v1070 = vpack.c.b16 %v794, %v792
    %v1071 = vpack.c.b16 %v795, %v793
    %v1072 = vpack.c.b16 %v798, %v796
    %v1073 = vpack.c.b16 %v799, %v797
    %v1074 = vpack.c.b16 %v802, %v800
    %v1075 = vpack.c.b16 %v803, %v801
    %v1076 = vpack.c.b16 %v806, %v804
    %v1077 = vpack.c.b16 %v807, %v805
    %v1078 = vpack.c.b16 %v810, %v808
    %v1079 = vpack.c.b16 %v811, %v809
    %v1080 = vpack.c.b16 %v814, %v812
    %v1081 = vpack.c.b16 %v815, %v813
    %v1082 = vpack.c.b16 %v818, %v816
    %v1083 = vpack.c.b16 %v819, %v817
    %v1084 = vpack.c.b16 %v822, %v820
    %v1085 = vpack.c.b16 %v823, %v821
    %v1086 = vpack.c.b16 %v826, %v824
    %v1087 = vpack.c.b16 %v827, %v825
    %v1088 = vpack.c.b16 %v830, %v828
    %v1089 = vpack.c.b16 %v831, %v829
    %v1090 = vpack.c.b16 %v834, %v832
    %v1091 = vpack.c.b16 %v835, %v833
    %v1092 = vpack.c.b16 %v838, %v836
    %v1093 = vpack.c.b16 %v839, %v837
    %v1094 = vpack.c.b16 %v842, %v840
    %v1095 = vpack.c.b16 %v843, %v841
    %v1096 = vpack.c.b16 %v846, %v844
    %v1097 = vpack.c.b16 %v847, %v845
    %v1098 = vpack.c.b16 %v850, %v848
    %v1099 = vpack.c.b16 %v851, %v849
    %v1100 = vpack.c.b16 %v854, %v852
    %v1101 = vpack.c.b16 %v855, %v853
    %v1102 = vpack.c.b16 %v858, %v856
    %v1103 = vpack.c.b16 %v859, %v857
    %v1104 = vpack.c.b16 %v862, %v860
    %v1105 = vpack.c.b16 %v863, %v861
    %v1106 = vpack.c.b16 %v866, %v864
    %v1107 = vpack.c.b16 %v867, %v865
    %v1108 = vpack.c.b16 %v870, %v868
    %v1109 = vpack.c.b16 %v871, %v869
    %v1110 = vpack.c.b16 %v874, %v872
    %v1111 = vpack.c.b16 %v875, %v873
    %v1112 = vpack.c.b16 %v878, %v876
    %v1113 = vpack.c.b16 %v879, %v877
    %v1114 = vpack.c.b16 %v882, %v880
    %v1115 = vpack.c.b16 %v883, %v881
    %v1116 = vpack.c.b16 %v886, %v884
    %v1117 = vpack.c.b16 %v887, %v885
    %v1118 = vpack.c.b16 %v890, %v888
    %v1119 = vpack.c.b16 %v891, %v889
    %v1120 = vpack.c.b16 %v894, %v892
    %v1121 = vpack.c.b16 %v895, %v893
    %v1122 = vpack.c.b16 %v898, %v896
    %v1123 = vpack.c.b16 %v899, %v897
    %v1124 = vpack.c.b16 %v902, %v900
    %v1125 = vpack.c.b16 %v903, %v901
    %v1126 = vpack.c.b16 %v906, %v904
    %v1127 = vpack.c.b16 %v907, %v905
    %v1128 = vpack.c.b16 %v910, %v908
    %v1129 = vpack.c.b16 %v911, %v909
    %v1130 = vpack.c.b16 %v914, %v912
    %v1131 = vpack.c.b16 %v915, %v913
    %v1132 = vpack.c.b16 %v918, %v916
    %v1133 = vpack.c.b16 %v919, %v917
    %v1134 = vpack.c.b16 %v922, %v920
    %v1135 = vpack.c.b16 %v923, %v921
    %v1136 = vpack.c.b16 %v926, %v924
    %v1137 = vpack.c.b16 %v927, %v925
    %v1138 = vpack.c.b16 %v930, %v928
    %v1139 = vpack.c.b16 %v931, %v929
    %v1140 = vpack.c.b16 %v934, %v932
    %v1141 = vpack.c.b16 %v935, %v933
    %v1142 = vpack.c.b16 %v938, %v936
    %v1143 = vpack.c.b16 %v939, %v937
    %v1144 = vpack.c.b16 %v942, %v940
    %v1145 = vpack.c.b16 %v943, %v941
    %v1146 = vpack.c.b16 %v946, %v944
    %v1147 = vpack.c.b16 %v947, %v945
    %v1148 = vpack.c.b16 %v950, %v948
    %v1149 = vpack.c.b16 %v951, %v949
    %v1150 = vpack.c.b16 %v954, %v952
    %v1151 = vpack.c.b16 %v955, %v953
    %v1152 = vpack.c.b16 %v958, %v956
    %v1153 = vpack.c.b16 %v959, %v957
    %v1154 = vpack.c.b16 %v962, %v960
    %v1155 = vpack.c.b16 %v963, %v961
    %v1156 = vpack.c.b16 %v966, %v964
    %v1157 = vpack.c.b16 %v967, %v965
    %v1158 = vpack.c.b16 %v970, %v968
    %v1159 = vpack.c.b16 %v971, %v969
    %v1160 = vpack.c.b16 %v974, %v972
    %v1161 = vpack.c.b16 %v975, %v973
    %v1162 = vpack.c.b16 %v978, %v976
    %v1163 = vpack.c.b16 %v979, %v977
    %v1164 = vpack.c.b16 %v982, %v980
    %v1165 = vpack.c.b16 %v983, %v981
    %v1166 = vpack.c.b16 %v986, %v984
    %v1167 = vpack.c.b16 %v987, %v985
    %v1168 = vpack.c.b16 %v990, %v988
    %v1169 = vpack.c.b16 %v991, %v989
    %v1170 = vpack.c.b16 %v994, %v992
    %v1171 = vpack.c.b16 %v995, %v993
    %v1172 = vpack.c.b16 %v998, %v996
    %v1173 = vpack.c.b16 %v999, %v997
    %v1174 = vpack.c.b16 %v1002, %v1000
    %v1175 = vpack.c.b16 %v1003, %v1001
    %v1176 = vpack.c.b16 %v1006, %v1004
    %v1177 = vpack.c.b16 %v1007, %v1005
    %v1178 = vpack.c.b16 %v1010, %v1008
    %v1179 = vpack.c.b16 %v1011, %v1009
    %v1180 = vpack.c.b16 %v1014, %v1012
    %v1181 = vpack.c.b16 %v1015, %v1013
    %v1182 = vpack.c.b16 %v1018, %v1016
    %v1183 = vpack.c.b16 %v1019, %v1017
    %v1184 = vpack.c.b16 %v1022, %v1020
    %v1185 = vpack.c.b16 %v1023, %v1021
    %v1186 = vpack.c.b16 %v1026, %v1024
    %v1187 = vpack.c.b16 %v1027, %v1025
    %v1188 = vpack.c.b16 %v1030, %v1028
    %v1189 = vpack.c.b16 %v1031, %v1029
    %v1190 = vpack.c.b16 %v1034, %v1032
    %v1191 = vpack.c.b16 %v1035, %v1033
    %v1192 = vpack.c.b16 %v1038, %v1036
    %v1193 = vpack.c.b16 %v1039, %v1037
    %v1194 = vpack.c.b16 %v1042, %v1040
    %v1195 = vpack.c.b16 %v1043, %v1041
    %v1196 = vpack.c.b16 %v1046, %v1044
    %v1197 = vpack.c.b16 %v1047, %v1045
    %v1198 = vpack.c.b16 %v1050, %v1048
    %v1199 = vpack.c.b16 %v1051, %v1049
    %v1200 = vpack.c.b16 %v1054, %v1052
    %v1201 = vpack.c.b16 %v1055, %v1053
    %v1202 = vpack.c.b16 %v1058, %v1056
    %v1203 = vpack.c.b16 %v1059, %v1057
    %v1204 = vpack.c.b16 %v1062, %v1060
    %v1205 = vpack.c.b16 %v1063, %v1061
    %v1206 = vpack.c.b16 %v1066, %v1064
    %v1207 = vpack.c.b16 %v1067, %v1065
    %vm1348 = vcmask 785408
    %v1350 = vsel %vm1348, %v503, 0
    %v1353 = vsel %vm1348, %v512, 0
    %v1356 = vsel %vm1348, %v521, 0
    %v1359 = vsel %vm1348, %v530, 0
    %v1362 = vsel %vm1348, %v539, 0
    %v1365 = vsel %vm1348, %v548, 0
    %v1368 = vsel %vm1348, %v557, 0
    %v1371 = vsel %vm1348, %v566, 0
    %v1374 = vsel %vm1348, %v575, 0
    %1376 = vmatprep.subr.bf16.mxu0 %v1069
    %1377 = vmatpush1.bf16.msra.mxu0 %v1068
    %1378 = vmatprep.subr.bf16.mxu0 %v1071
    %1379 = vmatpush1.bf16.msra.mxu0 %v1070
    %1380 = vmatprep.subr.bf16.mxu0 %v1073
    %1381 = vmatpush1.bf16.msra.mxu0 %v1072
    %1382 = vmatprep.subr.bf16.mxu0 %v1075
    %1383 = vmatpush1.bf16.msra.mxu0 %v1074
    %1384 = vmatprep.subr.bf16.mxu0 %v1077
    %1385 = vmatpush1.bf16.msra.mxu0 %v1076
    %1386 = vmatprep.subr.bf16.mxu0 %v1079
    %1387 = vmatpush1.bf16.msra.mxu0 %v1078
    %1388 = vmatprep.subr.bf16.mxu0 %v1081
    %1389 = vmatpush1.bf16.msra.mxu0 %v1080
    %1390 = vmatprep.subr.bf16.mxu0 %v1083
    %1391 = vmatpush1.bf16.msra.mxu0 %v1082
    %1392 = vmatprep.subr.bf16.mxu0 %v1085
    %1393 = vmatpush1.bf16.msra.mxu0 %v1084
    %1394 = vmatprep.subr.bf16.mxu0 %v1087
    %1395 = vmatpush1.bf16.msra.mxu0 %v1086
    %1396 = vmatprep.subr.bf16.mxu0 %v1089
    %1397 = vmatpush1.bf16.msra.mxu0 %v1088
    %1398 = vmatprep.subr.bf16.mxu0 %v1091
    %1399 = vmatpush1.bf16.msra.mxu0 %v1090
    %1400 = vmatprep.subr.bf16.mxu0 %v1093
    %1401 = vmatpush1.bf16.msra.mxu0 %v1092
    %1402 = vmatprep.subr.bf16.mxu0 %v1095
    %1403 = vmatpush1.bf16.msra.mxu0 %v1094
    %1404 = vmatprep.subr.bf16.mxu0 %v1097
    %1405 = vmatpush1.bf16.msra.mxu0 %v1096
    %1406 = vmatprep.subr.bf16.mxu0 %v1099
    %1407 = vmatpush1.bf16.msra.mxu0 %v1098
    %1408 = vmatprep.mubr.bf16.mxu0 %v496
    %1409 = vmatmul.mubr.bf16.gmra.mrb[0].mxu0 %v495
    %v1410 = vpop.f32.mrb[0].mxu0
    %v1411 = vadd.f32 0.0, %v1410
    %v1412 = vpop.f32.mrb[0].mxu0
    %v1413 = vadd.f32 0.0, %v1412
    %v1414 = vpop.f32.mrb[0].mxu0
    %v1415 = vadd.f32 0.0, %v1414
    %v1416 = vpop.f32.mrb[0].mxu0
    %v1417 = vadd.f32 0.0, %v1416
    %1418 = vmatprep.mubr.bf16.mxu0 %v505
    %1419 = vmatmul.mubr.bf16.gmra.mrb[0].mxu0 %v504
    %v1420 = vpop.f32.mrb[0].mxu0
    %v1421 = vadd.f32 0.0, %v1420
    %v1422 = vpop.f32.mrb[0].mxu0
    %v1423 = vadd.f32 0.0, %v1422
    %v1424 = vpop.f32.mrb[0].mxu0
    %v1425 = vadd.f32 0.0, %v1424
    %v1426 = vpop.f32.mrb[0].mxu0
    %v1427 = vadd.f32 0.0, %v1426
    %1428 = vmatprep.mubr.bf16.mxu0 %v514
    %1429 = vmatmul.mubr.bf16.gmra.mrb[0].mxu0 %v513
    %v1430 = vpop.f32.mrb[0].mxu0
    %v1431 = vadd.f32 0.0, %v1430
    %v1432 = vpop.f32.mrb[0].mxu0
    %v1433 = vadd.f32 0.0, %v1432
    %v1434 = vpop.f32.mrb[0].mxu0
    %v1435 = vadd.f32 0.0, %v1434
    %v1436 = vpop.f32.mrb[0].mxu0
    %v1437 = vadd.f32 0.0, %v1436
    %1438 = vmatprep.mubr.bf16.mxu0 %v523
    %1439 = vmatmul.mubr.bf16.gmra.mrb[0].mxu0 %v522
    %v1440 = vpop.f32.mrb[0].mxu0
    %v1441 = vadd.f32 0.0, %v1440
    %v1442 = vpop.f32.mrb[0].mxu0
    %v1443 = vadd.f32 0.0, %v1442
    %v1444 = vpop.f32.mrb[0].mxu0
    %v1445 = vadd.f32 0.0, %v1444
    %v1446 = vpop.f32.mrb[0].mxu0
    %v1447 = vadd.f32 0.0, %v1446
    %1448 = vmatprep.mubr.bf16.mxu0 %v532
    %1449 = vmatmul.mubr.bf16.gmra.mrb[0].mxu0 %v531
    %v1450 = vpop.f32.mrb[0].mxu0
    %v1451 = vadd.f32 0.0, %v1450
    %v1452 = vpop.f32.mrb[0].mxu0
    %v1453 = vadd.f32 0.0, %v1452
    %v1454 = vpop.f32.mrb[0].mxu0
    %v1455 = vadd.f32 0.0, %v1454
    %v1456 = vpop.f32.mrb[0].mxu0
    %v1457 = vadd.f32 0.0, %v1456
    %1458 = vmatprep.mubr.bf16.mxu0 %v541
    %1459 = vmatmul.mubr.bf16.gmra.mrb[0].mxu0 %v540
    %v1460 = vpop.f32.mrb[0].mxu0
    %v1461 = vadd.f32 0.0, %v1460
    %v1462 = vpop.f32.mrb[0].mxu0
    %v1463 = vadd.f32 0.0, %v1462
    %v1464 = vpop.f32.mrb[0].mxu0
    %v1465 = vadd.f32 0.0, %v1464
    %v1466 = vpop.f32.mrb[0].mxu0
    %v1467 = vadd.f32 0.0, %v1466
    %1468 = vmatprep.mubr.bf16.mxu0 %v550
    %1469 = vmatmul.mubr.bf16.gmra.mrb[0].mxu0 %v549
    %v1470 = vpop.f32.mrb[0].mxu0
    %v1471 = vadd.f32 0.0, %v1470
    %v1472 = vpop.f32.mrb[0].mxu0
    %v1473 = vadd.f32 0.0, %v1472
    %v1474 = vpop.f32.mrb[0].mxu0
    %v1475 = vadd.f32 0.0, %v1474
    %v1476 = vpop.f32.mrb[0].mxu0
    %v1477 = vadd.f32 0.0, %v1476
    %1478 = vmatprep.mubr.bf16.mxu0 %v559
    %1479 = vmatmul.mubr.bf16.gmra.mrb[0].mxu0 %v558
    %v1480 = vpop.f32.mrb[0].mxu0
    %v1481 = vadd.f32 0.0, %v1480
    %v1482 = vpop.f32.mrb[0].mxu0
    %v1483 = vadd.f32 0.0, %v1482
    %v1484 = vpop.f32.mrb[0].mxu0
    %v1485 = vadd.f32 0.0, %v1484
    %v1486 = vpop.f32.mrb[0].mxu0
    %v1487 = vadd.f32 0.0, %v1486
    %1488 = vmatprep.mubr.bf16.mxu0 %v568
    %1489 = vmatmul.mubr.bf16.gmra.mrb[0].mxu0 %v567
    %v1490 = vpop.f32.mrb[0].mxu0
    %v1491 = vadd.f32 0.0, %v1490
    %v1492 = vpop.f32.mrb[0].mxu0
    %v1493 = vadd.f32 0.0, %v1492
    %v1494 = vpop.f32.mrb[0].mxu0
    %v1495 = vadd.f32 0.0, %v1494
    %v1496 = vpop.f32.mrb[0].mxu0
    %v1497 = vadd.f32 0.0, %v1496
    %1498 = vdwg.mxu0
    %1499 = vmatprep.subr.bf16.mxu0 %v1101
    %1500 = vmatpush1.bf16.msra.mxu0 %v1100
    %1501 = vmatprep.subr.bf16.mxu0 %v1103
    %1502 = vmatpush1.bf16.msra.mxu0 %v1102
    %1503 = vmatprep.subr.bf16.mxu0 %v1105
    %1504 = vmatpush1.bf16.msra.mxu0 %v1104
    %1505 = vmatprep.subr.bf16.mxu0 %v1107
    %1506 = vmatpush1.bf16.msra.mxu0 %v1106
    %1507 = vmatprep.subr.bf16.mxu0 %v1109
    %1508 = vmatpush1.bf16.msra.mxu0 %v1108
    %1509 = vmatprep.subr.bf16.mxu0 %v1111
    %1510 = vmatpush1.bf16.msra.mxu0 %v1110
    %1511 = vmatprep.subr.bf16.mxu0 %v1113
    %1512 = vmatpush1.bf16.msra.mxu0 %v1112
    %1513 = vmatprep.subr.bf16.mxu0 %v1115
    %1514 = vmatpush1.bf16.msra.mxu0 %v1114
    %1515 = vmatprep.subr.bf16.mxu0 %v1117
    %1516 = vmatpush1.bf16.msra.mxu0 %v1116
    %1517 = vmatprep.subr.bf16.mxu0 %v1119
    %1518 = vmatpush1.bf16.msra.mxu0 %v1118
    %1519 = vmatprep.subr.bf16.mxu0 %v1121
    %1520 = vmatpush1.bf16.msra.mxu0 %v1120
    %1521 = vmatprep.subr.bf16.mxu0 %v1123
    %1522 = vmatpush1.bf16.msra.mxu0 %v1122
    %1523 = vmatprep.subr.bf16.mxu0 %v1125
    %1524 = vmatpush1.bf16.msra.mxu0 %v1124
    %1525 = vmatprep.subr.bf16.mxu0 %v1127
    %1526 = vmatpush1.bf16.msra.mxu0 %v1126
    %1527 = vmatprep.subr.bf16.mxu0 %v1129
    %1528 = vmatpush1.bf16.msra.mxu0 %v1128
    %1529 = vmatprep.subr.bf16.mxu0 %v1131
    %1530 = vmatpush1.bf16.msra.mxu0 %v1130
    %1531 = vmatprep.mubr.bf16.mxu0 %v498
    %1532 = vmatmul.mubr.bf16.gmra.mrb[0].mxu0 %v497
    %v1533 = vpop.f32.mrb[0].mxu0
    %v1534 = vadd.f32 %v1411, %v1533
    %v1535 = vpop.f32.mrb[0].mxu0
    %v1536 = vadd.f32 %v1413, %v1535
    %v1537 = vpop.f32.mrb[0].mxu0
    %v1538 = vadd.f32 %v1415, %v1537
    %v1539 = vpop.f32.mrb[0].mxu0
    %v1540 = vadd.f32 %v1417, %v1539
    %1541 = vmatprep.mubr.bf16.mxu0 %v507
    %1542 = vmatmul.mubr.bf16.gmra.mrb[0].mxu0 %v506
    %v1543 = vpop.f32.mrb[0].mxu0
    %v1544 = vadd.f32 %v1421, %v1543
    %v1545 = vpop.f32.mrb[0].mxu0
    %v1546 = vadd.f32 %v1423, %v1545
    %v1547 = vpop.f32.mrb[0].mxu0
    %v1548 = vadd.f32 %v1425, %v1547
    %v1549 = vpop.f32.mrb[0].mxu0
    %v1550 = vadd.f32 %v1427, %v1549
    %1551 = vmatprep.mubr.bf16.mxu0 %v516
    %1552 = vmatmul.mubr.bf16.gmra.mrb[0].mxu0 %v515
    %v1553 = vpop.f32.mrb[0].mxu0
    %v1554 = vadd.f32 %v1431, %v1553
    %v1555 = vpop.f32.mrb[0].mxu0
    %v1556 = vadd.f32 %v1433, %v1555
    %v1557 = vpop.f32.mrb[0].mxu0
    %v1558 = vadd.f32 %v1435, %v1557
    %v1559 = vpop.f32.mrb[0].mxu0
    %v1560 = vadd.f32 %v1437, %v1559
    %1561 = vmatprep.mubr.bf16.mxu0 %v525
    %1562 = vmatmul.mubr.bf16.gmra.mrb[0].mxu0 %v524
    %v1563 = vpop.f32.mrb[0].mxu0
    %v1564 = vadd.f32 %v1441, %v1563
    %v1565 = vpop.f32.mrb[0].mxu0
    %v1566 = vadd.f32 %v1443, %v1565
    %v1567 = vpop.f32.mrb[0].mxu0
    %v1568 = vadd.f32 %v1445, %v1567
    %v1569 = vpop.f32.mrb[0].mxu0
    %v1570 = vadd.f32 %v1447, %v1569
    %1571 = vmatprep.mubr.bf16.mxu0 %v534
    %1572 = vmatmul.mubr.bf16.gmra.mrb[0].mxu0 %v533
    %v1573 = vpop.f32.mrb[0].mxu0
    %v1574 = vadd.f32 %v1451, %v1573
    %v1575 = vpop.f32.mrb[0].mxu0
    %v1576 = vadd.f32 %v1453, %v1575
    %v1577 = vpop.f32.mrb[0].mxu0
    %v1578 = vadd.f32 %v1455, %v1577
    %v1579 = vpop.f32.mrb[0].mxu0
    %v1580 = vadd.f32 %v1457, %v1579
    %1581 = vmatprep.mubr.bf16.mxu0 %v543
    %1582 = vmatmul.mubr.bf16.gmra.mrb[0].mxu0 %v542
    %v1583 = vpop.f32.mrb[0].mxu0
    %v1584 = vadd.f32 %v1461, %v1583
    %v1585 = vpop.f32.mrb[0].mxu0
    %v1586 = vadd.f32 %v1463, %v1585
    %v1587 = vpop.f32.mrb[0].mxu0
    %v1588 = vadd.f32 %v1465, %v1587
    %v1589 = vpop.f32.mrb[0].mxu0
    %v1590 = vadd.f32 %v1467, %v1589
    %1591 = vmatprep.mubr.bf16.mxu0 %v552
    %1592 = vmatmul.mubr.bf16.gmra.mrb[0].mxu0 %v551
    %v1593 = vpop.f32.mrb[0].mxu0
    %v1594 = vadd.f32 %v1471, %v1593
    %v1595 = vpop.f32.mrb[0].mxu0
    %v1596 = vadd.f32 %v1473, %v1595
    %v1597 = vpop.f32.mrb[0].mxu0
    %v1598 = vadd.f32 %v1475, %v1597
    %v1599 = vpop.f32.mrb[0].mxu0
    %v1600 = vadd.f32 %v1477, %v1599
    %1601 = vmatprep.mubr.bf16.mxu0 %v561
    %1602 = vmatmul.mubr.bf16.gmra.mrb[0].mxu0 %v560
    %v1603 = vpop.f32.mrb[0].mxu0
    %v1604 = vadd.f32 %v1481, %v1603
    %v1605 = vpop.f32.mrb[0].mxu0
    %v1606 = vadd.f32 %v1483, %v1605
    %v1607 = vpop.f32.mrb[0].mxu0
    %v1608 = vadd.f32 %v1485, %v1607
    %v1609 = vpop.f32.mrb[0].mxu0
    %v1610 = vadd.f32 %v1487, %v1609
    %1611 = vmatprep.mubr.bf16.mxu0 %v570
    %1612 = vmatmul.mubr.bf16.gmra.mrb[0].mxu0 %v569
    %v1613 = vpop.f32.mrb[0].mxu0
    %v1614 = vadd.f32 %v1491, %v1613
    %v1615 = vpop.f32.mrb[0].mxu0
    %v1616 = vadd.f32 %v1493, %v1615
    %v1617 = vpop.f32.mrb[0].mxu0
    %v1618 = vadd.f32 %v1495, %v1617
    %v1619 = vpop.f32.mrb[0].mxu0
    %v1620 = vadd.f32 %v1497, %v1619
    %1621 = vdwg.mxu0
    %1622 = vmatprep.subr.bf16.mxu0 %v1133
    %1623 = vmatpush1.bf16.msra.mxu0 %v1132
    %1624 = vmatprep.subr.bf16.mxu0 %v1135
    %1625 = vmatpush1.bf16.msra.mxu0 %v1134
    %1626 = vmatprep.subr.bf16.mxu0 %v1137
    %1627 = vmatpush1.bf16.msra.mxu0 %v1136
    %1628 = vmatprep.subr.bf16.mxu0 %v1139
    %1629 = vmatpush1.bf16.msra.mxu0 %v1138
    %1630 = vmatprep.subr.bf16.mxu0 %v1141
    %1631 = vmatpush1.bf16.msra.mxu0 %v1140
    %1632 = vmatprep.subr.bf16.mxu0 %v1143
    %1633 = vmatpush1.bf16.msra.mxu0 %v1142
    %1634 = vmatprep.subr.bf16.mxu0 %v1145
    %1635 = vmatpush1.bf16.msra.mxu0 %v1144
    %1636 = vmatprep.subr.bf16.mxu0 %v1147
    %1637 = vmatpush1.bf16.msra.mxu0 %v1146
    %1638 = vmatprep.subr.bf16.mxu0 %v1149
    %1639 = vmatpush1.bf16.msra.mxu0 %v1148
    %1640 = vmatprep.subr.bf16.mxu0 %v1151
    %1641 = vmatpush1.bf16.msra.mxu0 %v1150
    %1642 = vmatprep.subr.bf16.mxu0 %v1153
    %1643 = vmatpush1.bf16.msra.mxu0 %v1152
    %1644 = vmatprep.subr.bf16.mxu0 %v1155
    %1645 = vmatpush1.bf16.msra.mxu0 %v1154
    %1646 = vmatprep.subr.bf16.mxu0 %v1157
    %1647 = vmatpush1.bf16.msra.mxu0 %v1156
    %1648 = vmatprep.subr.bf16.mxu0 %v1159
    %1649 = vmatpush1.bf16.msra.mxu0 %v1158
    %1650 = vmatprep.subr.bf16.mxu0 %v1161
    %1651 = vmatpush1.bf16.msra.mxu0 %v1160
    %1652 = vmatprep.subr.bf16.mxu0 %v1163
    %1653 = vmatpush1.bf16.msra.mxu0 %v1162
    %1654 = vmatprep.mubr.bf16.mxu0 %v500
    %1655 = vmatmul.mubr.bf16.gmra.mrb[0].mxu0 %v499
    %v1656 = vpop.f32.mrb[0].mxu0
    %v1657 = vadd.f32 %v1534, %v1656
    %v1658 = vpop.f32.mrb[0].mxu0
    %v1659 = vadd.f32 %v1536, %v1658
    %v1660 = vpop.f32.mrb[0].mxu0
    %v1661 = vadd.f32 %v1538, %v1660
    %v1662 = vpop.f32.mrb[0].mxu0
    %v1663 = vadd.f32 %v1540, %v1662
    %1664 = vmatprep.mubr.bf16.mxu0 %v509
    %1665 = vmatmul.mubr.bf16.gmra.mrb[0].mxu0 %v508
    %v1666 = vpop.f32.mrb[0].mxu0
    %v1667 = vadd.f32 %v1544, %v1666
    %v1668 = vpop.f32.mrb[0].mxu0
    %v1669 = vadd.f32 %v1546, %v1668
    %v1670 = vpop.f32.mrb[0].mxu0
    %v1671 = vadd.f32 %v1548, %v1670
    %v1672 = vpop.f32.mrb[0].mxu0
    %v1673 = vadd.f32 %v1550, %v1672
    %1674 = vmatprep.mubr.bf16.mxu0 %v518
    %1675 = vmatmul.mubr.bf16.gmra.mrb[0].mxu0 %v517
    %v1676 = vpop.f32.mrb[0].mxu0
    %v1677 = vadd.f32 %v1554, %v1676
    %v1678 = vpop.f32.mrb[0].mxu0
    %v1679 = vadd.f32 %v1556, %v1678
    %v1680 = vpop.f32.mrb[0].mxu0
    %v1681 = vadd.f32 %v1558, %v1680
    %v1682 = vpop.f32.mrb[0].mxu0
    %v1683 = vadd.f32 %v1560, %v1682
    %1684 = vmatprep.mubr.bf16.mxu0 %v527
    %1685 = vmatmul.mubr.bf16.gmra.mrb[0].mxu0 %v526
    %v1686 = vpop.f32.mrb[0].mxu0
    %v1687 = vadd.f32 %v1564, %v1686
    %v1688 = vpop.f32.mrb[0].mxu0
    %v1689 = vadd.f32 %v1566, %v1688
    %v1690 = vpop.f32.mrb[0].mxu0
    %v1691 = vadd.f32 %v1568, %v1690
    %v1692 = vpop.f32.mrb[0].mxu0
    %v1693 = vadd.f32 %v1570, %v1692
    %1694 = vmatprep.mubr.bf16.mxu0 %v536
    %1695 = vmatmul.mubr.bf16.gmra.mrb[0].mxu0 %v535
    %v1696 = vpop.f32.mrb[0].mxu0
    %v1697 = vadd.f32 %v1574, %v1696
    %v1698 = vpop.f32.mrb[0].mxu0
    %v1699 = vadd.f32 %v1576, %v1698
    %v1700 = vpop.f32.mrb[0].mxu0
    %v1701 = vadd.f32 %v1578, %v1700
    %v1702 = vpop.f32.mrb[0].mxu0
    %v1703 = vadd.f32 %v1580, %v1702
    %1704 = vmatprep.mubr.bf16.mxu0 %v545
    %1705 = vmatmul.mubr.bf16.gmra.mrb[0].mxu0 %v544
    %v1706 = vpop.f32.mrb[0].mxu0
    %v1707 = vadd.f32 %v1584, %v1706
    %v1708 = vpop.f32.mrb[0].mxu0
    %v1709 = vadd.f32 %v1586, %v1708
    %v1710 = vpop.f32.mrb[0].mxu0
    %v1711 = vadd.f32 %v1588, %v1710
    %v1712 = vpop.f32.mrb[0].mxu0
    %v1713 = vadd.f32 %v1590, %v1712
    %1714 = vmatprep.mubr.bf16.mxu0 %v554
    %1715 = vmatmul.mubr.bf16.gmra.mrb[0].mxu0 %v553
    %v1716 = vpop.f32.mrb[0].mxu0
    %v1717 = vadd.f32 %v1594, %v1716
    %v1718 = vpop.f32.mrb[0].mxu0
    %v1719 = vadd.f32 %v1596, %v1718
    %v1720 = vpop.f32.mrb[0].mxu0
    %v1721 = vadd.f32 %v1598, %v1720
    %v1722 = vpop.f32.mrb[0].mxu0
    %v1723 = vadd.f32 %v1600, %v1722
    %1724 = vmatprep.mubr.bf16.mxu0 %v563
    %1725 = vmatmul.mubr.bf16.gmra.mrb[0].mxu0 %v562
    %v1726 = vpop.f32.mrb[0].mxu0
    %v1727 = vadd.f32 %v1604, %v1726
    %v1728 = vpop.f32.mrb[0].mxu0
    %v1729 = vadd.f32 %v1606, %v1728
    %v1730 = vpop.f32.mrb[0].mxu0
    %v1731 = vadd.f32 %v1608, %v1730
    %v1732 = vpop.f32.mrb[0].mxu0
    %v1733 = vadd.f32 %v1610, %v1732
    %1734 = vmatprep.mubr.bf16.mxu0 %v572
    %1735 = vmatmul.mubr.bf16.gmra.mrb[0].mxu0 %v571
    %v1736 = vpop.f32.mrb[0].mxu0
    %v1737 = vadd.f32 %v1614, %v1736
    %v1738 = vpop.f32.mrb[0].mxu0
    %v1739 = vadd.f32 %v1616, %v1738
    %v1740 = vpop.f32.mrb[0].mxu0
    %v1741 = vadd.f32 %v1618, %v1740
    %v1742 = vpop.f32.mrb[0].mxu0
    %v1743 = vadd.f32 %v1620, %v1742
    %1744 = vdwg.mxu0
    %1745 = vmatprep.subr.bf16.mxu0 %v1165
    %1746 = vmatpush1.bf16.msra.mxu0 %v1164
    %1747 = vmatprep.subr.bf16.mxu0 %v1167
    %1748 = vmatpush1.bf16.msra.mxu0 %v1166
    %1749 = vmatprep.subr.bf16.mxu0 %v1169
    %1750 = vmatpush1.bf16.msra.mxu0 %v1168
    %1751 = vmatprep.subr.bf16.mxu0 %v1171
    %1752 = vmatpush1.bf16.msra.mxu0 %v1170
    %1753 = vmatprep.subr.bf16.mxu0 %v1173
    %1754 = vmatpush1.bf16.msra.mxu0 %v1172
    %1755 = vmatprep.subr.bf16.mxu0 %v1175
    %1756 = vmatpush1.bf16.msra.mxu0 %v1174
    %1757 = vmatprep.subr.bf16.mxu0 %v1177
    %1758 = vmatpush1.bf16.msra.mxu0 %v1176
    %1759 = vmatprep.subr.bf16.mxu0 %v1179
    %1760 = vmatpush1.bf16.msra.mxu0 %v1178
    %1761 = vmatprep.subr.bf16.mxu0 %v1181
    %1762 = vmatpush1.bf16.msra.mxu0 %v1180
    %1763 = vmatprep.subr.bf16.mxu0 %v1183
    %1764 = vmatpush1.bf16.msra.mxu0 %v1182
    %1765 = vmatprep.subr.bf16.mxu0 %v1185
    %1766 = vmatpush1.bf16.msra.mxu0 %v1184
    %1767 = vmatprep.subr.bf16.mxu0 %v1187
    %1768 = vmatpush1.bf16.msra.mxu0 %v1186
    %1769 = vmatprep.subr.bf16.mxu0 %v1189
    %1770 = vmatpush1.bf16.msra.mxu0 %v1188
    %1771 = vmatprep.subr.bf16.mxu0 %v1191
    %1772 = vmatpush1.bf16.msra.mxu0 %v1190
    %1773 = vmatprep.subr.bf16.mxu0 %v1193
    %1774 = vmatpush1.bf16.msra.mxu0 %v1192
    %1775 = vmatprep.subr.bf16.mxu0 %v1195
    %1776 = vmatpush1.bf16.msra.mxu0 %v1194
    %1777 = vmatprep.mubr.bf16.mxu0 %v502
    %1778 = vmatmul.mubr.bf16.gmra.mrb[0].mxu0 %v501
    %v1779 = vpop.f32.mrb[0].mxu0
    %v1780 = vadd.f32 %v1657, %v1779
    %v1781 = vpop.f32.mrb[0].mxu0
    %v1782 = vadd.f32 %v1659, %v1781
    %v1783 = vpop.f32.mrb[0].mxu0
    %v1784 = vadd.f32 %v1661, %v1783
    %v1785 = vpop.f32.mrb[0].mxu0
    %v1786 = vadd.f32 %v1663, %v1785
    %1787 = vmatprep.mubr.bf16.mxu0 %v511
    %1788 = vmatmul.mubr.bf16.gmra.mrb[0].mxu0 %v510
    %v1789 = vpop.f32.mrb[0].mxu0
    %v1790 = vadd.f32 %v1667, %v1789
    %v1791 = vpop.f32.mrb[0].mxu0
    %v1792 = vadd.f32 %v1669, %v1791
    %v1793 = vpop.f32.mrb[0].mxu0
    %v1794 = vadd.f32 %v1671, %v1793
    %v1795 = vpop.f32.mrb[0].mxu0
    %v1796 = vadd.f32 %v1673, %v1795
    %1797 = vmatprep.mubr.bf16.mxu0 %v520
    %1798 = vmatmul.mubr.bf16.gmra.mrb[0].mxu0 %v519
    %v1799 = vpop.f32.mrb[0].mxu0
    %v1800 = vadd.f32 %v1677, %v1799
    %v1801 = vpop.f32.mrb[0].mxu0
    %v1802 = vadd.f32 %v1679, %v1801
    %v1803 = vpop.f32.mrb[0].mxu0
    %v1804 = vadd.f32 %v1681, %v1803
    %v1805 = vpop.f32.mrb[0].mxu0
    %v1806 = vadd.f32 %v1683, %v1805
    %1807 = vmatprep.mubr.bf16.mxu0 %v529
    %1808 = vmatmul.mubr.bf16.gmra.mrb[0].mxu0 %v528
    %v1809 = vpop.f32.mrb[0].mxu0
    %v1810 = vadd.f32 %v1687, %v1809
    %v1811 = vpop.f32.mrb[0].mxu0
    %v1812 = vadd.f32 %v1689, %v1811
    %v1813 = vpop.f32.mrb[0].mxu0
    %v1814 = vadd.f32 %v1691, %v1813
    %v1815 = vpop.f32.mrb[0].mxu0
    %v1816 = vadd.f32 %v1693, %v1815
    %1817 = vmatprep.mubr.bf16.mxu0 %v538
    %1818 = vmatmul.mubr.bf16.gmra.mrb[0].mxu0 %v537
    %v1819 = vpop.f32.mrb[0].mxu0
    %v1820 = vadd.f32 %v1697, %v1819
    %v1821 = vpop.f32.mrb[0].mxu0
    %v1822 = vadd.f32 %v1699, %v1821
    %v1823 = vpop.f32.mrb[0].mxu0
    %v1824 = vadd.f32 %v1701, %v1823
    %v1825 = vpop.f32.mrb[0].mxu0
    %v1826 = vadd.f32 %v1703, %v1825
    %1827 = vmatprep.mubr.bf16.mxu0 %v547
    %1828 = vmatmul.mubr.bf16.gmra.mrb[0].mxu0 %v546
    %v1829 = vpop.f32.mrb[0].mxu0
    %v1830 = vadd.f32 %v1707, %v1829
    %v1831 = vpop.f32.mrb[0].mxu0
    %v1832 = vadd.f32 %v1709, %v1831
    %v1833 = vpop.f32.mrb[0].mxu0
    %v1834 = vadd.f32 %v1711, %v1833
    %v1835 = vpop.f32.mrb[0].mxu0
    %v1836 = vadd.f32 %v1713, %v1835
    %1837 = vmatprep.mubr.bf16.mxu0 %v556
    %1838 = vmatmul.mubr.bf16.gmra.mrb[0].mxu0 %v555
    %v1839 = vpop.f32.mrb[0].mxu0
    %v1840 = vadd.f32 %v1717, %v1839
    %v1841 = vpop.f32.mrb[0].mxu0
    %v1842 = vadd.f32 %v1719, %v1841
    %v1843 = vpop.f32.mrb[0].mxu0
    %v1844 = vadd.f32 %v1721, %v1843
    %v1845 = vpop.f32.mrb[0].mxu0
    %v1846 = vadd.f32 %v1723, %v1845
    %1847 = vmatprep.mubr.bf16.mxu0 %v565
    %1848 = vmatmul.mubr.bf16.gmra.mrb[0].mxu0 %v564
    %v1849 = vpop.f32.mrb[0].mxu0
    %v1850 = vadd.f32 %v1727, %v1849
    %v1851 = vpop.f32.mrb[0].mxu0
    %v1852 = vadd.f32 %v1729, %v1851
    %v1853 = vpop.f32.mrb[0].mxu0
    %v1854 = vadd.f32 %v1731, %v1853
    %v1855 = vpop.f32.mrb[0].mxu0
    %v1856 = vadd.f32 %v1733, %v1855
    %1857 = vmatprep.mubr.bf16.mxu0 %v574
    %1858 = vmatmul.mubr.bf16.gmra.mrb[0].mxu0 %v573
    %v1859 = vpop.f32.mrb[0].mxu0
    %v1860 = vadd.f32 %v1737, %v1859
    %v1861 = vpop.f32.mrb[0].mxu0
    %v1862 = vadd.f32 %v1739, %v1861
    %v1863 = vpop.f32.mrb[0].mxu0
    %v1864 = vadd.f32 %v1741, %v1863
    %v1865 = vpop.f32.mrb[0].mxu0
    %v1866 = vadd.f32 %v1743, %v1865
    %1867 = vdwg.mxu0
    %1868 = vmatprep.subr.bf16.mxu0 %v1197
    %1869 = vmatpush1.bf16.msra.mxu0 %v1196
    %1870 = vmatprep.subr.bf16.mxu0 %v1199
    %1871 = vmatpush1.bf16.msra.mxu0 %v1198
    %1872 = vmatprep.subr.bf16.mxu0 %v1201
    %1873 = vmatpush1.bf16.msra.mxu0 %v1200
    %1874 = vmatprep.subr.bf16.mxu0 %v1203
    %1875 = vmatpush1.bf16.msra.mxu0 %v1202
    %1876 = vmatprep.subr.bf16.mxu0 %v1205
    %1877 = vmatpush1.bf16.msra.mxu0 %v1204
    %1878 = vmatprep.subr.bf16.mxu0 %v1207
    %1879 = vmatpush1.bf16.msra.mxu0 %v1206
    %1880 = vmatprep.subr.bf16.mxu0 0
    %1881 = vmatpush1.bf16.msra.mxu0 0
    %1882 = vmatprep.subr.bf16.mxu0 0
    %1883 = vmatpush1.bf16.msra.mxu0 0
    %1884 = vmatprep.subr.bf16.mxu0 0
    %1885 = vmatpush1.bf16.msra.mxu0 0
    %1886 = vmatprep.subr.bf16.mxu0 0
    %1887 = vmatpush1.bf16.msra.mxu0 0
    %1888 = vmatprep.subr.bf16.mxu0 0
    %1889 = vmatpush1.bf16.msra.mxu0 0
    %1890 = vmatprep.subr.bf16.mxu0 0
    %1891 = vmatpush1.bf16.msra.mxu0 0
    %1892 = vmatprep.subr.bf16.mxu0 0
    %1893 = vmatpush1.bf16.msra.mxu0 0
    %1894 = vmatprep.subr.bf16.mxu0 0
    %1895 = vmatpush1.bf16.msra.mxu0 0
    %1896 = vmatprep.subr.bf16.mxu0 0
    %1897 = vmatpush1.bf16.msra.mxu0 0
    %1898 = vmatprep.subr.bf16.mxu0 0
    %1899 = vmatpush1.bf16.msra.mxu0 0
    %1900 = vmatprep.mubr.bf16.mxu0 0
    %1901 = vmatmul.mubr.bf16.gmra.mrb[0].mxu0 %v1350
    %v1902 = vpop.f32.mrb[0].mxu0
    %v1903 = vadd.f32 %v1780, %v1902
    %v1904 = vpop.f32.mrb[0].mxu0
    %v1905 = vadd.f32 %v1782, %v1904
    %v1906 = vpop.f32.mrb[0].mxu0
    %v1907 = vadd.f32 %v1784, %v1906
    %v1908 = vpop.f32.mrb[0].mxu0
    %v1909 = vadd.f32 %v1786, %v1908
    %1910 = vmatprep.mubr.bf16.mxu0 0
    %1911 = vmatmul.mubr.bf16.gmra.mrb[0].mxu0 %v1353
    %v1912 = vpop.f32.mrb[0].mxu0
    %v1913 = vadd.f32 %v1790, %v1912
    %v1914 = vpop.f32.mrb[0].mxu0
    %v1915 = vadd.f32 %v1792, %v1914
    %v1916 = vpop.f32.mrb[0].mxu0
    %v1917 = vadd.f32 %v1794, %v1916
    %v1918 = vpop.f32.mrb[0].mxu0
    %v1919 = vadd.f32 %v1796, %v1918
    %1920 = vmatprep.mubr.bf16.mxu0 0
    %1921 = vmatmul.mubr.bf16.gmra.mrb[0].mxu0 %v1356
    %v1922 = vpop.f32.mrb[0].mxu0
    %v1923 = vadd.f32 %v1800, %v1922
    %v1924 = vpop.f32.mrb[0].mxu0
    %v1925 = vadd.f32 %v1802, %v1924
    %v1926 = vpop.f32.mrb[0].mxu0
    %v1927 = vadd.f32 %v1804, %v1926
    %v1928 = vpop.f32.mrb[0].mxu0
    %v1929 = vadd.f32 %v1806, %v1928
    %1930 = vmatprep.mubr.bf16.mxu0 0
    %1931 = vmatmul.mubr.bf16.gmra.mrb[0].mxu0 %v1359
    %v1932 = vpop.f32.mrb[0].mxu0
    %v1933 = vadd.f32 %v1810, %v1932
    %v1934 = vpop.f32.mrb[0].mxu0
    %v1935 = vadd.f32 %v1812, %v1934
    %v1936 = vpop.f32.mrb[0].mxu0
    %v1937 = vadd.f32 %v1814, %v1936
    %v1938 = vpop.f32.mrb[0].mxu0
    %v1939 = vadd.f32 %v1816, %v1938
    %1940 = vmatprep.mubr.bf16.mxu0 0
    %1941 = vmatmul.mubr.bf16.gmra.mrb[0].mxu0 %v1362
    %v1942 = vpop.f32.mrb[0].mxu0
    %v1943 = vadd.f32 %v1820, %v1942
    %v1944 = vpop.f32.mrb[0].mxu0
    %v1945 = vadd.f32 %v1822, %v1944
    %v1946 = vpop.f32.mrb[0].mxu0
    %v1947 = vadd.f32 %v1824, %v1946
    %v1948 = vpop.f32.mrb[0].mxu0
    %v1949 = vadd.f32 %v1826, %v1948
    %1950 = vmatprep.mubr.bf16.mxu0 0
    %1951 = vmatmul.mubr.bf16.gmra.mrb[0].mxu0 %v1365
    %v1952 = vpop.f32.mrb[0].mxu0
    %v1953 = vadd.f32 %v1830, %v1952
    %v1954 = vpop.f32.mrb[0].mxu0
    %v1955 = vadd.f32 %v1832, %v1954
    %v1956 = vpop.f32.mrb[0].mxu0
    %v1957 = vadd.f32 %v1834, %v1956
    %v1958 = vpop.f32.mrb[0].mxu0
    %v1959 = vadd.f32 %v1836, %v1958
    %1960 = vmatprep.mubr.bf16.mxu0 0
    %1961 = vmatmul.mubr.bf16.gmra.mrb[0].mxu0 %v1368
    %v1962 = vpop.f32.mrb[0].mxu0
    %v1963 = vadd.f32 %v1840, %v1962
    %v1964 = vpop.f32.mrb[0].mxu0
    %v1965 = vadd.f32 %v1842, %v1964
    %v1966 = vpop.f32.mrb[0].mxu0
    %v1967 = vadd.f32 %v1844, %v1966
    %v1968 = vpop.f32.mrb[0].mxu0
    %v1969 = vadd.f32 %v1846, %v1968
    %1970 = vmatprep.mubr.bf16.mxu0 0
    %1971 = vmatmul.mubr.bf16.gmra.mrb[0].mxu0 %v1371
    %v1972 = vpop.f32.mrb[0].mxu0
    %v1973 = vadd.f32 %v1850, %v1972
    %v1974 = vpop.f32.mrb[0].mxu0
    %v1975 = vadd.f32 %v1852, %v1974
    %v1976 = vpop.f32.mrb[0].mxu0
    %v1977 = vadd.f32 %v1854, %v1976
    %v1978 = vpop.f32.mrb[0].mxu0
    %v1979 = vadd.f32 %v1856, %v1978
    %1980 = vmatprep.mubr.bf16.mxu0 0
    %1981 = vmatmul.mubr.bf16.gmra.mrb[0].mxu0 %v1374
    %v1982 = vpop.f32.mrb[0].mxu0
    %v1983 = vadd.f32 %v1860, %v1982
    %v1984 = vpop.f32.mrb[0].mxu0
    %v1985 = vadd.f32 %v1862, %v1984
    %v1986 = vpop.f32.mrb[0].mxu0
    %v1987 = vadd.f32 %v1864, %v1986
    %v1988 = vpop.f32.mrb[0].mxu0
    %v1989 = vadd.f32 %v1866, %v1988
    %1990 = vdwg.mxu0
    %1991 = vst [vmem:[#allocation2] sm:$0xff] %v1903
    %vm1992 = vcmask 523264
    %1993 = vst.msk [vmem:[#allocation2 + $0x8] sm:$0xff] %vm1992, %v1905
    %1994 = vst [vmem:[#allocation2 + $0x10] sm:$0xff] %v1907
    %1995 = vst.msk [vmem:[#allocation2 + $0x18] sm:$0xff] %vm1992, %v1909
    %1996 = vst [vmem:[#allocation2 + $0x20] sm:$0xff] %v1913
    %1997 = vst.msk [vmem:[#allocation2 + $0x28] sm:$0xff] %vm1992, %v1915
    %1998 = vst [vmem:[#allocation2 + $0x30] sm:$0xff] %v1917
    %1999 = vst.msk [vmem:[#allocation2 + $0x38] sm:$0xff] %vm1992, %v1919
    %2000 = vst [vmem:[#allocation2 + $0x40] sm:$0xff] %v1923
    %2001 = vst.msk [vmem:[#allocation2 + $0x48] sm:$0xff] %vm1992, %v1925
    %2002 = vst [vmem:[#allocation2 + $0x50] sm:$0xff] %v1927
    %2003 = vst.msk [vmem:[#allocation2 + $0x58] sm:$0xff] %vm1992, %v1929
    %2004 = vst [vmem:[#allocation2 + $0x60] sm:$0xff] %v1933
    %2005 = vst.msk [vmem:[#allocation2 + $0x68] sm:$0xff] %vm1992, %v1935
    %2006 = vst [vmem:[#allocation2 + $0x70] sm:$0xff] %v1937
    %2007 = vst.msk [vmem:[#allocation2 + $0x78] sm:$0xff] %vm1992, %v1939
    %2008 = vst [vmem:[#allocation2 + $0x80] sm:$0xff] %v1943
    %2009 = vst.msk [vmem:[#allocation2 + $0x88] sm:$0xff] %vm1992, %v1945
    %2010 = vst [vmem:[#allocation2 + $0x90] sm:$0xff] %v1947
    %2011 = vst.msk [vmem:[#allocation2 + $0x98] sm:$0xff] %vm1992, %v1949
    %2012 = vst [vmem:[#allocation2 + $0xa0] sm:$0xff] %v1953
    %2013 = vst.msk [vmem:[#allocation2 + $0xa8] sm:$0xff] %vm1992, %v1955
    %2014 = vst [vmem:[#allocation2 + $0xb0] sm:$0xff] %v1957
    %2015 = vst.msk [vmem:[#allocation2 + $0xb8] sm:$0xff] %vm1992, %v1959
    %2016 = vst [vmem:[#allocation2 + $0xc0] sm:$0xff] %v1963
    %2017 = vst.msk [vmem:[#allocation2 + $0xc8] sm:$0xff] %vm1992, %v1965
    %2018 = vst [vmem:[#allocation2 + $0xd0] sm:$0xff] %v1967
    %2019 = vst.msk [vmem:[#allocation2 + $0xd8] sm:$0xff] %vm1992, %v1969
    %2020 = vst [vmem:[#allocation2 + $0xe0] sm:$0xff] %v1973
    %2021 = vst.msk [vmem:[#allocation2 + $0xe8] sm:$0xff] %vm1992, %v1975
    %2022 = vst [vmem:[#allocation2 + $0xf0] sm:$0xff] %v1977
    %2023 = vst.msk [vmem:[#allocation2 + $0xf8] sm:$0xff] %vm1992, %v1979
    %2024 = vst [vmem:[#allocation2 + $0x100] sm:$0xff] %v1983
    %2025 = vst.msk [vmem:[#allocation2 + $0x108] sm:$0xff] %vm1992, %v1985
    %2026 = vst [vmem:[#allocation2 + $0x110] sm:$0xff] %v1987
    %2027 = vst.msk [vmem:[#allocation2 + $0x118] sm:$0xff] %vm1992, %v1989
    // Predicated region
    $region10: #{tpu_custom_call.1} parent=1 // pred_check
      _
    $region11: #{tpu_custom_call.1} parent=1 // pred_check_branch
      %2029 = sbr.rel (0) target = $region13
    $region12: #{tpu_custom_call.1} parent=1 // pred_region
      %s2031 = ssub.s32 4608, 4608
      %2032 = vsyncadd [#allocation3], %s2031
      %s2033 = sshll.u32 [#allocation2], 4
      %s2034 = int_to_ptr.vmem [resolvable:$true] %s2033
      %2039 = dma.vmem_to_hbm [thread:$0]  %s2034, 4608, %s2, [#allocation3], 256, 256, 16
    $region13: #{tpu_custom_call.1} parent=1 // pred_fallthru
      _
    // Predicated region
    $region14: #{tpu_custom_call.1} parent=1 // pred_check
      _
    $region15: #{tpu_custom_call.1} parent=1 // pred_check_branch
      %2041 = sbr.rel (0) target = $region17
    $region16: #{tpu_custom_call.1} parent=1 // pred_region
      %2042 = dma.done [#allocation3], 4608
    $region17: #{tpu_custom_call.1} parent=1 // pred_fallthru
      _
    %2043 = vsyncpa [#allocation3], 1

</llo_original>
